<compile_context>
chip_gen: v5e
topology: v5e:2x2
jax: 0.10.0
libtpu: 0.0.40
codegen_flags: <defaults>
</compile_context>

<pallas_src>
import functools
import math

import jax
import jax.numpy as jnp
from jax.experimental import pallas as pl
from jax.experimental.pallas import tpu as pltpu


# ----------------------------------------------------------------------------- helpers
def _round_up(x, m):
    return ((x + m - 1) // m) * m


def _vmem_capacity_bytes():
    try:
        return int(pltpu.get_tpu_info().vmem_capacity_bytes)
    except Exception:
        return 64 * 1024 * 1024          # conservative fallback (v7x per-core VMEM)


def _pad2(rows, cols, itemsize):
    """Approximate VMEM footprint of a 2-D tile after (8, 128) layout padding."""
    return _round_up(max(rows, 1), 8) * _round_up(max(cols, 1), 128) * itemsize


# ------------------------------------------------------------------- prologue: projection
def _proj_split_heads_kernel(x_ref, w_ref, o_ref):
    """o[0, h, :, :] = (x[0] @ w)[:, h*Dh:(h+1)*Dh]  -- one full-width MXU matmul."""
    num_heads = o_ref.shape[1]
    head_dim = o_ref.shape[3]
    p = jnp.dot(x_ref[0], w_ref[...], preferred_element_type=jnp.float32)
    p = p.astype(o_ref.dtype)
    # Head split = lane slices -> leading axis; runs once per token tile (not in the
    # flash kv loop), so the small static loop here is layout plumbing, not hot compute.
    for h in range(num_heads):
        o_ref[0, h] = p[:, h * head_dim:(h + 1) * head_dim]


def _project_split_heads(x, w_t, *, num_heads, head_dim, tile):
    """(B, S, D) @ (D, D) -> (B, H, S, Dh), projected once per token (hoisted)."""
    B, S, D = x.shape
    assert S % tile == 0
    n_s = S // tile
    cs = jnp.dtype(x.dtype).itemsize

    est = (2 * _pad2(tile, D, cs)                              # x block (double-buffered)
           + 2 * _pad2(D, D, cs)                               # weight
           + 2 * num_heads * _pad2(tile, head_dim, cs)         # output block
           + 2 * _pad2(tile, D, 4))                            # f32 matmul temporary
    cap = (_vmem_capacity_bytes() * 3) // 4
    vmem_limit = int(min(cap, max(32 * 1024 * 1024, 2 * est)))

    return pl.pallas_call(
        _proj_split_heads_kernel,
        out_shape=jax.ShapeDtypeStruct((B, num_heads, S, head_dim), x.dtype),
        grid_spec=pltpu.PrefetchScalarGridSpec(
            num_scalar_prefetch=0,
            grid=(B, n_s),
            in_specs=[
                pl.BlockSpec((1, tile, D), lambda b, si: (b, si, 0)),
                pl.BlockSpec((D, D), lambda b, si: (0, 0)),
            ],
            out_specs=pl.BlockSpec((1, num_heads, tile, head_dim),
                                   lambda b, si: (b, 0, si, 0)),
        ),
        compiler_params=pltpu.CompilerParams(
            dimension_semantics=("parallel", "parallel"),
            vmem_limit_bytes=vmem_limit,
        ),
    )(x, w_t)


# --------------------------------------------------------- flash attention + output proj
def _flash_attn_kernel(q_ref, k_ref, v_ref, wo_ref, bo_ref, out_ref,
                       m_ref, l_ref, acc_ref, comb_ref, *, kv_len, mask_kv):
    """One grid step: (batch b, query-tile qi, kv-tile ki).

    Blocks:
      q_ref        (1, H, TQ, Dh)  bf16, softmax scale already folded into Wq
      k_ref/v_ref  (1, H, TK, Dh)  bf16
      wo_ref       (D, D)          bf16 (pre-transposed output projection)
      bo_ref       (1, D)          f32
      out_ref      (1, TQ, D)      resident across the kv axis
    Scratch (persist across the kv steps of one (b, qi)):
      m_ref/l_ref  (H, TQ, 1)  f32 running max / denominator
      acc_ref      (H, TQ, Dh) f32 un-normalized attention accumulator
      comb_ref     (TQ, D)     bf16 head-concat buffer for the fused Wo matmul
    """
    ki = pl.program_id(2)
    f32 = jnp.float32
    cdt = comb_ref.dtype
    num_heads, _, head_dim = acc_ref.shape

    @pl.when(ki == 0)
    def _init():
        m_ref[...] = jnp.full(m_ref.shape, -jnp.inf, dtype=f32)
        l_ref[...] = jnp.zeros(l_ref.shape, dtype=f32)
        acc_ref[...] = jnp.zeros(acc_ref.shape, dtype=f32)

    qp = q_ref[0]                                   # (H, TQ, Dh)
    kp = k_ref[0]                                   # (H, TK, Dh)
    vp = v_ref[0]                                   # (H, TK, Dh)
    tk = kp.shape[1]

    # All-head scores in one batched MXU contraction (no materialized transpose).
    s = jnp.einsum("hqd,hkd->hqk", qp, kp, preferred_element_type=f32)   # (H, TQ, TK)

    if mask_kv:   # static flag: only when the kv sequence was zero-padded
        col = ki * tk + jax.lax.broadcasted_iota(jnp.int32, (1, 1, tk), 2)
        s = jnp.where(col < kv_len, s, -jnp.inf)

    # Online softmax, all heads at once.  exp stays f32 (v5e has no bf16 EUP);
    # on v6e/v7x a bf16 exp is an option if profiling shows the EUP saturating.
    m_prev = m_ref[...]
    m_new = jnp.maximum(m_prev, jnp.max(s, axis=-1, keepdims=True))
    alpha = jnp.exp(m_prev - m_new)
    p = jnp.exp(s - m_new)
    l_ref[...] = alpha * l_ref[...] + jnp.sum(p, axis=-1, keepdims=True)
    acc_ref[...] = alpha * acc_ref[...] + jnp.einsum(
        "hqk,hkd->hqd", p.astype(cdt), vp, preferred_element_type=f32)
    m_ref[...] = m_new

    @pl.when(ki == pl.num_programs(2) - 1)
    def _finalize():
        attn = (acc_ref[...] * pl.reciprocal(l_ref[...], approx=False)).astype(cdt)
        # Fused head-combine + output projection: concat heads at lane offsets, then
        # a single D-deep matmul against Wo (runs once per (b, qi)).
        for h in range(num_heads):
            comb_ref[:, h * head_dim:(h + 1) * head_dim] = attn[h]
        out = jnp.dot(comb_ref[...], wo_ref[...], preferred_element_type=f32)
        out_ref[0] = (out + bo_ref[...]).astype(out_ref.dtype)


# --------------------------------------------------------------------------- public API
def multi_head_attention(query, key, value, wq, wk, wv, wo, bo, *, num_heads,
                         block=None, compute_dtype=jnp.bfloat16):
    """Pallas TPU forward pass of the PyTorch MultiHeadAttention module."""
    # TODO(synk): the optional attention-mask (masked_fill) path is not implemented;
    #             this covers the mask=None forward only.
    B, S_q, D = query.shape
    Bk, S_kv, Dk = key.shape
    assert value.shape == key.shape and Bk == B and Dk == D
    assert D % num_heads == 0, "d_model must be divisible by num_heads"
    Dh = D // num_heads
    f32 = jnp.float32

    vmem_cap = _vmem_capacity_bytes()
    if block is None:
        # v5e/v6e (128 MiB VMEM): larger tiles amortize grid-step overhead for long
        # sequences; v7x (64 MiB): stay at 256.  Keep the batched (H, TQ, TK) softmax
        # temporaries modest when bumping.
        block = 256
        if (vmem_cap >= 100 * 1024 * 1024 and min(S_q, S_kv) >= 1024
                and 3 * num_heads * 512 * 512 * 4 <= vmem_cap // 3):
            block = 512
    block = max(8, _round_up(block, 8))

    def tile_and_pad(s):
        if s <= block:
            return s, s                       # single full-length tile, no padding
        return block, _round_up(s, block)     # pad < one tile; masked in the kernel

    TQ, Sq_pad = tile_and_pad(S_q)
    TK, Skv_pad = tile_and_pad(S_kv)
    n_q, n_kv = Sq_pad // TQ, Skv_pad // TK
    mask_kv = Skv_pad != S_kv

    # Weight prep (PyTorch Linear stores (out, in); y = x @ W.T).  Softmax scale is
    # folded into Wq so the score matmul needs no per-element rescale.
    inv_scale = 1.0 / math.sqrt(Dh)
    wq_t = (jnp.asarray(wq, f32).T * inv_scale).astype(compute_dtype)
    wk_t = jnp.asarray(wk, f32).T.astype(compute_dtype)
    wv_t = jnp.asarray(wv, f32).T.astype(compute_dtype)
    wo_t = jnp.asarray(wo, f32).T.astype(compute_dtype)
    bo2 = jnp.asarray(bo, f32).reshape(1, D)

    def prep(x, s_pad):
        x = x.astype(compute_dtype)
        s = x.shape[1]
        if s_pad != s:
            x = jnp.pad(x, ((0, 0), (0, s_pad - s), (0, 0)))
        return x

    q_in = prep(query, Sq_pad)
    k_in = prep(key, Skv_pad)
    v_in = prep(value, Skv_pad)

    # ---- prologue: hoisted full-width QKV projection + head split (Pallas) ----
    q_h = _project_split_heads(q_in, wq_t, num_heads=num_heads, head_dim=Dh, tile=TQ)
    k_h = _project_split_heads(k_in, wk_t, num_heads=num_heads, head_dim=Dh, tile=TK)
    v_h = _project_split_heads(v_in, wv_t, num_heads=num_heads, head_dim=Dh, tile=TK)

    # ---- flash attention with fused head-combine + output projection (Pallas) ----
    cs = jnp.dtype(compute_dtype).itemsize
    out_item = jnp.dtype(query.dtype).itemsize
    est = (2 * num_heads * _pad2(TQ, Dh, cs)            # q block (double-buffered)
           + 2 * 2 * num_heads * _pad2(TK, Dh, cs)      # k, v blocks
           + 2 * _pad2(D, D, cs)                        # Wo
           + 2 * _pad2(1, D, 4)                         # bo
           + 2 * _pad2(TQ, D, out_item)                 # output block
           + 2 * num_heads * _pad2(TQ, 1, 4)            # m, l scratch (lane-padded)
           + num_heads * _pad2(TQ, Dh, 4)               # acc scratch
           + _pad2(TQ, D, cs)                           # head-concat scratch
           + 3 * num_heads * _pad2(TQ, TK, 4))          # s / p / alpha temporaries
    cap = (vmem_cap * 3) // 4                           # ~48 MiB v7x, ~96 MiB v6e
    vmem_limit = int(min(cap, max(32 * 1024 * 1024, 2 * est)))

    kernel = functools.partial(_flash_attn_kernel, kv_len=S_kv, mask_kv=mask_kv)

    # NOTE(v7x): B * n_q "parallel" tiles are what the two TensorCores shard over.
    grid = (B, n_q, n_kv)
    out_padded = pl.pallas_call(
        kernel,
        out_shape=jax.ShapeDtypeStruct((B, Sq_pad, D), query.dtype),
        grid_spec=pltpu.PrefetchScalarGridSpec(
            num_scalar_prefetch=0,
            grid=grid,
            in_specs=[
                pl.BlockSpec((1, num_heads, TQ, Dh), lambda b, qi, ki: (b, 0, qi, 0)),
                pl.BlockSpec((1, num_heads, TK, Dh), lambda b, qi, ki: (b, 0, ki, 0)),
                pl.BlockSpec((1, num_heads, TK, Dh), lambda b, qi, ki: (b, 0, ki, 0)),
                pl.BlockSpec((D, D), lambda b, qi, ki: (0, 0)),
                pl.BlockSpec((1, D), lambda b, qi, ki: (0, 0)),
            ],
            out_specs=pl.BlockSpec((1, TQ, D), lambda b, qi, ki: (b, qi, 0)),
            scratch_shapes=[
                pltpu.VMEM((num_heads, TQ, 1), f32),     # running max
                pltpu.VMEM((num_heads, TQ, 1), f32),     # running denominator
                pltpu.VMEM((num_heads, TQ, Dh), f32),    # un-normalized accumulator
                pltpu.VMEM((TQ, D), compute_dtype),      # head-concat for Wo matmul
            ],
        ),
        compiler_params=pltpu.CompilerParams(
            dimension_semantics=("parallel", "parallel", "arbitrary"),
            vmem_limit_bytes=vmem_limit,
        ),
    )(q_h, k_h, v_h, wo_t, bo2)

    if Sq_pad != S_q:
        out_padded = out_padded[:, :S_q, :]
    return out_padded


# ------------------------------------------------------------------------------ reference
def _reference_mha(query, key, value, wq, wk, wv, wo, bo, *, num_heads):
    """Pure-JAX f32 reference replicating the PyTorch module semantics (mask=None)."""
    B, S_q, D = query.shape
    head_dim = D // num_heads

    def split(x):
        b, s, _ = x.shape
        return x.reshape(b, s, num_heads, head_dim).transpose(0, 2, 1, 3)

    Q = split(query @ wq.T)
    K = split(key @ wk.T)
    V = split(value @ wv.T)
    scores = jnp.einsum("bhqd,bhkd->bhqk", Q, K) / math.sqrt(head_dim)
    weights = jax.nn.softmax(scores, axis=-1)
    attn = jnp.einsum("bhqk,bhkd->bhqd", weights, V)
    combined = attn.transpose(0, 2, 1, 3).reshape(B, S_q, D)
    return combined @ wo.T + bo


if __name__ == "__main__":
    # Small shapes consistent with the module: d_model=32, num_heads=4, batch=2, seq=8.
    B, S, D, H = 2, 8, 32, 4

    key0 = jax.random.PRNGKey(0)
    k_q, k_k, k_v, k_wq, k_wk, k_wv, k_wo, k_bo = jax.random.split(key0, 8)

    query = jax.random.normal(k_q, (B, S, D), dtype=jnp.float32)
    key_in = jax.random.normal(k_k, (B, S, D), dtype=jnp.float32)
    value = jax.random.normal(k_v, (B, S, D), dtype=jnp.float32)

    # PyTorch nn.Linear convention: weight shape (out_features, in_features).
    scale = 1.0 / math.sqrt(D)
    wq = jax.random.uniform(k_wq, (D, D), jnp.float32, -scale, scale)
    wk = jax.random.uniform(k_wk, (D, D), jnp.float32, -scale, scale)
    wv = jax.random.uniform(k_wv, (D, D), jnp.float32, -scale, scale)
    wo = jax.random.uniform(k_wo, (D, D), jnp.float32, -scale, scale)
    bo = jax.random.uniform(k_bo, (D,), jnp.float32, -scale, scale)

    mha = jax.jit(functools.partial(multi_head_attention, num_heads=H))
    out = jax.block_until_ready(mha(query, key_in, value, wq, wk, wv, wo, bo))

    ref = _reference_mha(query, key_in, value, wq, wk, wv, wo, bo, num_heads=H)
    assert out.shape == (B, S, D)
    max_err = float(jnp.max(jnp.abs(out - ref)))
    # bf16 MXU inputs with f32 accumulation vs f32 reference: bf16-level tolerance.
    assert jnp.allclose(out, ref, atol=3e-2, rtol=3e-2), \
        f"mismatch vs reference, max abs err={max_err}"

    print("KERNEL_OK")
</pallas_src>

<mosaic_0001>
module attributes {stable_mosaic.version = 11 : i64} {
  func.func @_proj_split_heads_kernel(%arg0: i32, %arg1: i32, %arg2: memref<1x8x32xbf16, #tpu.memory_space<vmem>>, %arg3: memref<32x32xbf16, #tpu.memory_space<vmem>>, %arg4: memref<1x4x8x8xbf16, #tpu.memory_space<vmem>>) attributes {dimension_semantics = [#tpu.dimension_semantics<parallel>, #tpu.dimension_semantics<parallel>], iteration_bounds = array<i64: 2, 1>, scalar_prefetch = 0 : i64, scratch_operands = 0 : i64, tpu.core_type = #tpu.core_type<tc>, window_params = [{transform_indices = @transform_0, window_bounds = array<i64: 1, 8, 32>}, {pipeline_mode = #tpu.pipeline_mode<synchronous>, transform_indices = @transform_1, window_bounds = array<i64: 32, 32>}, {transform_indices = @transform_2, window_bounds = array<i64: 1, 4, 8, 8>}]} {
    %c0 = arith.constant 0 : index
    %c0_0 = arith.constant 0 : index
    %c0_1 = arith.constant 0 : index
    %0 = vector.load %arg2[%c0, %c0_0, %c0_1] : memref<1x8x32xbf16, #tpu.memory_space<vmem>>, vector<1x8x32xbf16>
    %1 = vector.shape_cast %0 : vector<1x8x32xbf16> to vector<8x32xbf16>
    %c0_2 = arith.constant 0 : index
    %c0_3 = arith.constant 0 : index
    %2 = vector.load %arg3[%c0_2, %c0_3] : memref<32x32xbf16, #tpu.memory_space<vmem>>, vector<32x32xbf16>
    %cst = arith.constant dense<0.000000e+00> : vector<8x32xf32>
    %3 = tpu.matmul %1, %2, %cst {dimension_numbers = #tpu.dot_dimension_numbers<[1], [0], [0], [1], [0, 0, 1, 1], [], []>} : vector<8x32xbf16>, vector<32x32xbf16>, vector<8x32xf32> -> vector<8x32xf32>
    %4 = arith.truncf %3 : vector<8x32xf32> to vector<8x32xbf16>
    %5 = vector.extract_strided_slice %4 {offsets = [0, 0], sizes = [8, 8], strides = [1, 1]} : vector<8x32xbf16> to vector<8x8xbf16>
    %c0_4 = arith.constant 0 : index
    %c0_5 = arith.constant 0 : index
    %c0_6 = arith.constant 0 : index
    %c0_7 = arith.constant 0 : index
    %6 = vector.load %arg4[%c0_4, %c0_5, %c0_6, %c0_7] : memref<1x4x8x8xbf16, #tpu.memory_space<vmem>>, vector<1x1x8x8xbf16>
    %7 = vector.shape_cast %6 : vector<1x1x8x8xbf16> to vector<8x8xbf16>
    %8 = vector.shape_cast %5 : vector<8x8xbf16> to vector<1x1x8x8xbf16>
    tpu.vector_store %arg4[%c0_4, %c0_5, %c0_6, %c0_7], %8 {strides = array<i32>} : memref<1x4x8x8xbf16, #tpu.memory_space<vmem>>, vector<1x1x8x8xbf16>,
    %9 = vector.extract_strided_slice %4 {offsets = [0, 8], sizes = [8, 8], strides = [1, 1]} : vector<8x32xbf16> to vector<8x8xbf16>
    %c0_8 = arith.constant 0 : index
    %c1 = arith.constant 1 : index
    %c0_9 = arith.constant 0 : index
    %c0_10 = arith.constant 0 : index
    %10 = vector.load %arg4[%c0_8, %c1, %c0_9, %c0_10] : memref<1x4x8x8xbf16, #tpu.memory_space<vmem>>, vector<1x1x8x8xbf16>
    %11 = vector.shape_cast %10 : vector<1x1x8x8xbf16> to vector<8x8xbf16>
    %12 = vector.shape_cast %9 : vector<8x8xbf16> to vector<1x1x8x8xbf16>
    tpu.vector_store %arg4[%c0_8, %c1, %c0_9, %c0_10], %12 {strides = array<i32>} : memref<1x4x8x8xbf16, #tpu.memory_space<vmem>>, vector<1x1x8x8xbf16>,
    %13 = vector.extract_strided_slice %4 {offsets = [0, 16], sizes = [8, 8], strides = [1, 1]} : vector<8x32xbf16> to vector<8x8xbf16>
    %c0_11 = arith.constant 0 : index
    %c2 = arith.constant 2 : index
    %c0_12 = arith.constant 0 : index
    %c0_13 = arith.constant 0 : index
    %14 = vector.load %arg4[%c0_11, %c2, %c0_12, %c0_13] : memref<1x4x8x8xbf16, #tpu.memory_space<vmem>>, vector<1x1x8x8xbf16>
    %15 = vector.shape_cast %14 : vector<1x1x8x8xbf16> to vector<8x8xbf16>
    %16 = vector.shape_cast %13 : vector<8x8xbf16> to vector<1x1x8x8xbf16>
    tpu.vector_store %arg4[%c0_11, %c2, %c0_12, %c0_13], %16 {strides = array<i32>} : memref<1x4x8x8xbf16, #tpu.memory_space<vmem>>, vector<1x1x8x8xbf16>,
    %17 = vector.extract_strided_slice %4 {offsets = [0, 24], sizes = [8, 8], strides = [1, 1]} : vector<8x32xbf16> to vector<8x8xbf16>
    %c0_14 = arith.constant 0 : index
    %c3 = arith.constant 3 : index
    %c0_15 = arith.constant 0 : index
    %c0_16 = arith.constant 0 : index
    %18 = vector.load %arg4[%c0_14, %c3, %c0_15, %c0_16] : memref<1x4x8x8xbf16, #tpu.memory_space<vmem>>, vector<1x1x8x8xbf16>
    %19 = vector.shape_cast %18 : vector<1x1x8x8xbf16> to vector<8x8xbf16>
    %20 = vector.shape_cast %17 : vector<8x8xbf16> to vector<1x1x8x8xbf16>
    tpu.vector_store %arg4[%c0_14, %c3, %c0_15, %c0_16], %20 {strides = array<i32>} : memref<1x4x8x8xbf16, #tpu.memory_space<vmem>>, vector<1x1x8x8xbf16>,
    return
  }
  func.func @transform_0(%arg0: i32, %arg1: i32) -> (i32, i32, i32) {
    %c0_i32 = arith.constant 0 : i32
    %c0_i32_0 = arith.constant 0 : i32
    return %arg0, %arg1, %c0_i32 : i32, i32, i32
  }
  func.func @transform_1(%arg0: i32, %arg1: i32) -> (i32, i32) {
    %c0_i32 = arith.constant 0 : i32
    %c0_i32_0 = arith.constant 0 : i32
    %c0_i32_1 = arith.constant 0 : i32
    return %c0_i32, %c0_i32_0 : i32, i32
  }
  func.func @transform_2(%arg0: i32, %arg1: i32) -> (i32, i32, i32, i32) {
    %c0_i32 = arith.constant 0 : i32
    %c0_i32_0 = arith.constant 0 : i32
    %c0_i32_1 = arith.constant 0 : i32
    return %arg0, %c0_i32, %arg1, %c0_i32_0 : i32, i32, i32, i32
  }
}

module attributes {stable_mosaic.version = 11 : i64} {
  func.func @_flash_attn_kernel(%arg0: i32, %arg1: i32, %arg2: i32, %arg3: memref<1x4x8x8xbf16, #tpu.memory_space<vmem>>, %arg4: memref<1x4x8x8xbf16, #tpu.memory_space<vmem>>, %arg5: memref<1x4x8x8xbf16, #tpu.memory_space<vmem>>, %arg6: memref<32x32xbf16, #tpu.memory_space<vmem>>, %arg7: memref<1x32xf32, #tpu.memory_space<vmem>>, %arg8: memref<1x8x32xf32, #tpu.memory_space<vmem>>, %arg9: memref<4x8x1xf32, #tpu.memory_space<vmem>>, %arg10: memref<4x8x1xf32, #tpu.memory_space<vmem>>, %arg11: memref<4x8x8xf32, #tpu.memory_space<vmem>>, %arg12: memref<8x32xbf16, #tpu.memory_space<vmem>>) attributes {dimension_semantics = [#tpu.dimension_semantics<parallel>, #tpu.dimension_semantics<parallel>, #tpu.dimension_semantics<arbitrary>], iteration_bounds = array<i64: 2, 1, 1>, scalar_prefetch = 0 : i64, scratch_operands = 4 : i64, tpu.core_type = #tpu.core_type<tc>, window_params = [{transform_indices = @transform_0, window_bounds = array<i64: 1, 4, 8, 8>}, {transform_indices = @transform_1, window_bounds = array<i64: 1, 4, 8, 8>}, {transform_indices = @transform_2, window_bounds = array<i64: 1, 4, 8, 8>}, {pipeline_mode = #tpu.pipeline_mode<synchronous>, transform_indices = @transform_3, window_bounds = array<i64: 32, 32>}, {pipeline_mode = #tpu.pipeline_mode<synchronous>, transform_indices = @transform_4, window_bounds = array<i64: 1, 32>}, {transform_indices = @transform_5, window_bounds = array<i64: 1, 8, 32>}]} {
    %c0_i32 = arith.constant 0 : i32
    %0 = arith.cmpi eq, %arg2, %c0_i32 : i32
    %1 = arith.extui %0 : i1 to i32
    %c0_i32_0 = arith.constant 0 : i32
    %2 = arith.cmpi ne, %1, %c0_i32_0 : i32
    scf.if %2 {
      %cst_35 = arith.constant 0xFF800000 : f32
      %36 = vector.broadcast %cst_35 : f32 to vector<4x8x1xf32>
      %c0_36 = arith.constant 0 : index
      %c0_37 = arith.constant 0 : index
      %c0_38 = arith.constant 0 : index
      %37 = vector.load %arg9[%c0_36, %c0_37, %c0_38] : memref<4x8x1xf32, #tpu.memory_space<vmem>>, vector<4x8x1xf32>
      tpu.vector_store %arg9[%c0_36, %c0_37, %c0_38], %36 {strides = array<i32>} : memref<4x8x1xf32, #tpu.memory_space<vmem>>, vector<4x8x1xf32>,
      %cst_39 = arith.constant 0.000000e+00 : f32
      %38 = vector.broadcast %cst_39 : f32 to vector<4x8x1xf32>
      %c0_40 = arith.constant 0 : index
      %c0_41 = arith.constant 0 : index
      %c0_42 = arith.constant 0 : index
      %39 = vector.load %arg10[%c0_40, %c0_41, %c0_42] : memref<4x8x1xf32, #tpu.memory_space<vmem>>, vector<4x8x1xf32>
      tpu.vector_store %arg10[%c0_40, %c0_41, %c0_42], %38 {strides = array<i32>} : memref<4x8x1xf32, #tpu.memory_space<vmem>>, vector<4x8x1xf32>,
      %cst_43 = arith.constant 0.000000e+00 : f32
      %40 = vector.broadcast %cst_43 : f32 to vector<4x8x8xf32>
      %c0_44 = arith.constant 0 : index
      %c0_45 = arith.constant 0 : index
      %c0_46 = arith.constant 0 : index
      %41 = vector.load %arg11[%c0_44, %c0_45, %c0_46] : memref<4x8x8xf32, #tpu.memory_space<vmem>>, vector<4x8x8xf32>
      tpu.vector_store %arg11[%c0_44, %c0_45, %c0_46], %40 {strides = array<i32>} : memref<4x8x8xf32, #tpu.memory_space<vmem>>, vector<4x8x8xf32>,
    } else {
    }
    %c0 = arith.constant 0 : index
    %c0_1 = arith.constant 0 : index
    %c0_2 = arith.constant 0 : index
    %c0_3 = arith.constant 0 : index
    %3 = vector.load %arg3[%c0, %c0_1, %c0_2, %c0_3] : memref<1x4x8x8xbf16, #tpu.memory_space<vmem>>, vector<1x4x8x8xbf16>
    %4 = vector.shape_cast %3 : vector<1x4x8x8xbf16> to vector<4x8x8xbf16>
    %c0_4 = arith.constant 0 : index
    %c0_5 = arith.constant 0 : index
    %c0_6 = arith.constant 0 : index
    %c0_7 = arith.constant 0 : index
    %5 = vector.load %arg4[%c0_4, %c0_5, %c0_6, %c0_7] : memref<1x4x8x8xbf16, #tpu.memory_space<vmem>>, vector<1x4x8x8xbf16>
    %6 = vector.shape_cast %5 : vector<1x4x8x8xbf16> to vector<4x8x8xbf16>
    %c0_8 = arith.constant 0 : index
    %c0_9 = arith.constant 0 : index
    %c0_10 = arith.constant 0 : index
    %c0_11 = arith.constant 0 : index
    %7 = vector.load %arg5[%c0_8, %c0_9, %c0_10, %c0_11] : memref<1x4x8x8xbf16, #tpu.memory_space<vmem>>, vector<1x4x8x8xbf16>
    %8 = vector.shape_cast %7 : vector<1x4x8x8xbf16> to vector<4x8x8xbf16>
    "tpu.trace_start"() <{level = 10 : i32, message = "hqd,hkd->hqk"}> : () -> ()
    %cst = arith.constant dense<0.000000e+00> : vector<4x8x8xf32>
    %9 = tpu.matmul %4, %6, %cst {dimension_numbers = #tpu.dot_dimension_numbers<[2], [2], [1], [1], [0, 0, 0, 1, 1, 1], [0], [0]>} : vector<4x8x8xbf16>, vector<4x8x8xbf16>, vector<4x8x8xf32> -> vector<4x8x8xf32>
    "tpu.trace_stop"() : () -> ()
    %c0_12 = arith.constant 0 : index
    %c0_13 = arith.constant 0 : index
    %c0_14 = arith.constant 0 : index
    %10 = vector.load %arg9[%c0_12, %c0_13, %c0_14] : memref<4x8x1xf32, #tpu.memory_space<vmem>>, vector<4x8x1xf32>
    %cst_15 = arith.constant dense<0xFF800000> : vector<4x8xf32>
    %11 = vector.multi_reduction <maximumf>, %9, %cst_15 [2] : vector<4x8x8xf32> to vector<4x8xf32>
    %12 = vector.shape_cast %11 : vector<4x8xf32> to vector<4x8x1xf32>
    %13 = arith.maximumf %10, %12 : vector<4x8x1xf32>
    %14 = arith.subf %10, %13 : vector<4x8x1xf32>
    %15 = math.exp %14 : vector<4x8x1xf32>
    %16 = vector.broadcast %13 : vector<4x8x1xf32> to vector<4x8x8xf32>
    %17 = arith.subf %9, %16 : vector<4x8x8xf32>
    %18 = math.exp %17 : vector<4x8x8xf32>
    %c0_16 = arith.constant 0 : index
    %c0_17 = arith.constant 0 : index
    %c0_18 = arith.constant 0 : index
    %19 = vector.load %arg10[%c0_16, %c0_17, %c0_18] : memref<4x8x1xf32, #tpu.memory_space<vmem>>, vector<4x8x1xf32>
    %20 = arith.mulf %15, %19 : vector<4x8x1xf32>
    %cst_19 = arith.constant dense<0.000000e+00> : vector<4x8xf32>
    %21 = vector.multi_reduction <add>, %18, %cst_19 [2] : vector<4x8x8xf32> to vector<4x8xf32>
    %22 = vector.shape_cast %21 : vector<4x8xf32> to vector<4x8x1xf32>
    %23 = arith.addf %20, %22 : vector<4x8x1xf32>
    %c0_20 = arith.constant 0 : index
    %c0_21 = arith.constant 0 : index
    %c0_22 = arith.constant 0 : index
    %24 = vector.load %arg10[%c0_20, %c0_21, %c0_22] : memref<4x8x1xf32, #tpu.memory_space<vmem>>, vector<4x8x1xf32>
    tpu.vector_store %arg10[%c0_20, %c0_21, %c0_22], %23 {strides = array<i32>} : memref<4x8x1xf32, #tpu.memory_space<vmem>>, vector<4x8x1xf32>,
    %c0_23 = arith.constant 0 : index
    %c0_24 = arith.constant 0 : index
    %c0_25 = arith.constant 0 : index
    %25 = vector.load %arg11[%c0_23, %c0_24, %c0_25] : memref<4x8x8xf32, #tpu.memory_space<vmem>>, vector<4x8x8xf32>
    %26 = vector.broadcast %15 : vector<4x8x1xf32> to vector<4x8x8xf32>
    %27 = arith.mulf %26, %25 : vector<4x8x8xf32>
    %28 = arith.truncf %18 : vector<4x8x8xf32> to vector<4x8x8xbf16>
    "tpu.trace_start"() <{level = 10 : i32, message = "hqk,hkd->hqd"}> : () -> ()
    %cst_26 = arith.constant dense<0.000000e+00> : vector<4x8x8xf32>
    %29 = tpu.matmul %28, %8, %cst_26 {dimension_numbers = #tpu.dot_dimension_numbers<[2], [1], [1], [2], [0, 0, 0, 1, 1, 2], [0], [0]>} : vector<4x8x8xbf16>, vector<4x8x8xbf16>, vector<4x8x8xf32> -> vector<4x8x8xf32>
    "tpu.trace_stop"() : () -> ()
    %30 = arith.addf %27, %29 : vector<4x8x8xf32>
    %c0_27 = arith.constant 0 : index
    %c0_28 = arith.constant 0 : index
    %c0_29 = arith.constant 0 : index
    %31 = vector.load %arg11[%c0_27, %c0_28, %c0_29] : memref<4x8x8xf32, #tpu.memory_space<vmem>>, vector<4x8x8xf32>
    tpu.vector_store %arg11[%c0_27, %c0_28, %c0_29], %30 {strides = array<i32>} : memref<4x8x8xf32, #tpu.memory_space<vmem>>, vector<4x8x8xf32>,
    %c0_30 = arith.constant 0 : index
    %c0_31 = arith.constant 0 : index
    %c0_32 = arith.constant 0 : index
    %32 = vector.load %arg9[%c0_30, %c0_31, %c0_32] : memref<4x8x1xf32, #tpu.memory_space<vmem>>, vector<4x8x1xf32>
    tpu.vector_store %arg9[%c0_30, %c0_31, %c0_32], %13 {strides = array<i32>} : memref<4x8x1xf32, #tpu.memory_space<vmem>>, vector<4x8x1xf32>,
    %c0_i32_33 = arith.constant 0 : i32
    %33 = arith.cmpi eq, %arg2, %c0_i32_33 : i32
    %34 = arith.extui %33 : i1 to i32
    %c0_i32_34 = arith.constant 0 : i32
    %35 = arith.cmpi ne, %34, %c0_i32_34 : i32
    scf.if %35 {
      %c0_35 = arith.constant 0 : index
      %c0_36 = arith.constant 0 : index
      %c0_37 = arith.constant 0 : index
      %36 = vector.load %arg11[%c0_35, %c0_36, %c0_37] : memref<4x8x8xf32, #tpu.memory_space<vmem>>, vector<4x8x8xf32>
      %c0_38 = arith.constant 0 : index
      %c0_39 = arith.constant 0 : index
      %c0_40 = arith.constant 0 : index
      %37 = vector.load %arg10[%c0_38, %c0_39, %c0_40] : memref<4x8x1xf32, #tpu.memory_space<vmem>>, vector<4x8x1xf32>
      %38 = tpu.reciprocal %37 : vector<4x8x1xf32> -> vector<4x8x1xf32>
      %39 = vector.broadcast %38 : vector<4x8x1xf32> to vector<4x8x8xf32>
      %40 = arith.mulf %36, %39 : vector<4x8x8xf32>
      %41 = arith.truncf %40 : vector<4x8x8xf32> to vector<4x8x8xbf16>
      %42 = vector.extract_strided_slice %41 {offsets = [0, 0, 0], sizes = [1, 8, 8], strides = [1, 1, 1]} : vector<4x8x8xbf16> to vector<1x8x8xbf16>
      %43 = vector.shape_cast %42 : vector<1x8x8xbf16> to vector<8x8xbf16>
      %c0_41 = arith.constant 0 : index
      %c0_42 = arith.constant 0 : index
      %44 = vector.load %arg12[%c0_41, %c0_42] : memref<8x32xbf16, #tpu.memory_space<vmem>>, vector<8x8xbf16>
      tpu.vector_store %arg12[%c0_41, %c0_42], %43 {strides = array<i32>} : memref<8x32xbf16, #tpu.memory_space<vmem>>, vector<8x8xbf16>,
      %45 = vector.extract_strided_slice %41 {offsets = [1, 0, 0], sizes = [1, 8, 8], strides = [1, 1, 1]} : vector<4x8x8xbf16> to vector<1x8x8xbf16>
      %46 = vector.shape_cast %45 : vector<1x8x8xbf16> to vector<8x8xbf16>
      %c0_43 = arith.constant 0 : index
      %c8 = arith.constant 8 : index
      %47 = vector.load %arg12[%c0_43, %c8] : memref<8x32xbf16, #tpu.memory_space<vmem>>, vector<8x8xbf16>
      tpu.vector_store %arg12[%c0_43, %c8], %46 {strides = array<i32>} : memref<8x32xbf16, #tpu.memory_space<vmem>>, vector<8x8xbf16>,
      %48 = vector.extract_strided_slice %41 {offsets = [2, 0, 0], sizes = [1, 8, 8], strides = [1, 1, 1]} : vector<4x8x8xbf16> to vector<1x8x8xbf16>
      %49 = vector.shape_cast %48 : vector<1x8x8xbf16> to vector<8x8xbf16>
      %c0_44 = arith.constant 0 : index
      %c16 = arith.constant 16 : index
      %50 = vector.load %arg12[%c0_44, %c16] : memref<8x32xbf16, #tpu.memory_space<vmem>>, vector<8x8xbf16>
      tpu.vector_store %arg12[%c0_44, %c16], %49 {strides = array<i32>} : memref<8x32xbf16, #tpu.memory_space<vmem>>, vector<8x8xbf16>,
      %51 = vector.extract_strided_slice %41 {offsets = [3, 0, 0], sizes = [1, 8, 8], strides = [1, 1, 1]} : vector<4x8x8xbf16> to vector<1x8x8xbf16>
      %52 = vector.shape_cast %51 : vector<1x8x8xbf16> to vector<8x8xbf16>
      %c0_45 = arith.constant 0 : index
      %c24 = arith.constant 24 : index
      %53 = vector.load %arg12[%c0_45, %c24] : memref<8x32xbf16, #tpu.memory_space<vmem>>, vector<8x8xbf16>
      tpu.vector_store %arg12[%c0_45, %c24], %52 {strides = array<i32>} : memref<8x32xbf16, #tpu.memory_space<vmem>>, vector<8x8xbf16>,
      %c0_46 = arith.constant 0 : index
      %c0_47 = arith.constant 0 : index
      %54 = vector.load %arg12[%c0_46, %c0_47] : memref<8x32xbf16, #tpu.memory_space<vmem>>, vector<8x32xbf16>
      %c0_48 = arith.constant 0 : index
      %c0_49 = arith.constant 0 : index
      %55 = vector.load %arg6[%c0_48, %c0_49] : memref<32x32xbf16, #tpu.memory_space<vmem>>, vector<32x32xbf16>
      %cst_50 = arith.constant dense<0.000000e+00> : vector<8x32xf32>
      %56 = tpu.matmul %54, %55, %cst_50 {dimension_numbers = #tpu.dot_dimension_numbers<[1], [0], [0], [1], [0, 0, 1, 1], [], []>} : vector<8x32xbf16>, vector<32x32xbf16>, vector<8x32xf32> -> vector<8x32xf32>
      %c0_51 = arith.constant 0 : index
      %c0_52 = arith.constant 0 : index
      %57 = vector.load %arg7[%c0_51, %c0_52] : memref<1x32xf32, #tpu.memory_space<vmem>>, vector<1x32xf32>
      %58 = vector.broadcast %57 : vector<1x32xf32> to vector<8x32xf32>
      %59 = arith.addf %56, %58 : vector<8x32xf32>
      %c0_53 = arith.constant 0 : index
      %c0_54 = arith.constant 0 : index
      %c0_55 = arith.constant 0 : index
      %60 = vector.load %arg8[%c0_53, %c0_54, %c0_55] : memref<1x8x32xf32, #tpu.memory_space<vmem>>, vector<1x8x32xf32>
      %61 = vector.shape_cast %60 : vector<1x8x32xf32> to vector<8x32xf32>
      %62 = vector.shape_cast %59 : vector<8x32xf32> to vector<1x8x32xf32>
      tpu.vector_store %arg8[%c0_53, %c0_54, %c0_55], %62 {strides = array<i32>} : memref<1x8x32xf32, #tpu.memory_space<vmem>>, vector<1x8x32xf32>,
    } else {
    }
    return
  }
  func.func @transform_0(%arg0: i32, %arg1: i32, %arg2: i32) -> (i32, i32, i32, i32) {
    %c0_i32 = arith.constant 0 : i32
    %c0_i32_0 = arith.constant 0 : i32
    %c0_i32_1 = arith.constant 0 : i32
    return %arg0, %c0_i32, %arg1, %c0_i32_0 : i32, i32, i32, i32
  }
  func.func @transform_1(%arg0: i32, %arg1: i32, %arg2: i32) -> (i32, i32, i32, i32) {
    %c0_i32 = arith.constant 0 : i32
    %c0_i32_0 = arith.constant 0 : i32
    %c0_i32_1 = arith.constant 0 : i32
    return %arg0, %c0_i32, %arg2, %c0_i32_0 : i32, i32, i32, i32
  }
  func.func @transform_2(%arg0: i32, %arg1: i32, %arg2: i32) -> (i32, i32, i32, i32) {
    %c0_i32 = arith.constant 0 : i32
    %c0_i32_0 = arith.constant 0 : i32
    %c0_i32_1 = arith.constant 0 : i32
    return %arg0, %c0_i32, %arg2, %c0_i32_0 : i32, i32, i32, i32
  }
  func.func @transform_3(%arg0: i32, %arg1: i32, %arg2: i32) -> (i32, i32) {
    %c0_i32 = arith.constant 0 : i32
    %c0_i32_0 = arith.constant 0 : i32
    %c0_i32_1 = arith.constant 0 : i32
    return %c0_i32, %c0_i32_0 : i32, i32
  }
  func.func @transform_4(%arg0: i32, %arg1: i32, %arg2: i32) -> (i32, i32) {
    %c0_i32 = arith.constant 0 : i32
    %c0_i32_0 = arith.constant 0 : i32
    %c0_i32_1 = arith.constant 0 : i32
    return %c0_i32, %c0_i32_0 : i32, i32
  }
  func.func @transform_5(%arg0: i32, %arg1: i32, %arg2: i32) -> (i32, i32, i32) {
    %c0_i32 = arith.constant 0 : i32
    %c0_i32_0 = arith.constant 0 : i32
    return %arg0, %arg1, %c0_i32 : i32, i32, i32
  }
}

</mosaic_0001>

<llo_original>
// kernel: multi_head_attention.4
$region0: #{multi_head_attention.4}
  #allocation0 [shape = 'u32[]', space=smem, size = 0x4, offset = 0x4, fixed_abs, tag = 'smem constant byte address 0x4 - core index']
  #allocation1 [shape = 'u32[72,128]{1,0:T(1,128)}', space=vmem, size = 0x9000, scoped, tag = 'internal scratch']
  %s0 = inlined_call_operand.vmem [shape: bf16[2,8,32], index: 0, kind: input, shape index: {}]
  %s1 = inlined_call_operand.vmem [shape: bf16[32,32], index: 1, kind: input, shape index: {}]
  %s2 = inlined_call_operand.vmem [shape: bf16[2,4,8,8], index: 2, kind: output, shape index: {}]
  %s3 = sld [smem:[#allocation0]]
  $region41: #{multi_head_attention.4} parent=0
    _
  %s5 = ssub.s32 1, %s3
  %s6 = scalar_select 0, %s5, %s3
  loop: start=0, step=1, limit=4
  $region2: #{multi_head_attention.4} parent=0 // loop_pre_header
    _
  $region3: #{multi_head_attention.4} parent=0 // loop_header
    %s8 = sphi 0, %s12
    %p9 = scmp.ge.s32.totalorder %s8, 4
    %s15 = sphi 0, %s27
    %s16 = sphi 0, %s23
    %s17 = sphi 0, %s15
    %s18 = sphi 0, %s16
    %s19 = sphi 0, %s17
    %s20 = sphi 0, %s18
    %s32 = sphi 0, %s34
    %s35 = sphi 0, %s32
    %s36 = sphi 0, %s35
    %s52 = sphi 0, %s36
    %s56 = sphi 0, %s56
    %s58 = sphi 0, %s56
    %s59 = sphi 0, %s58
    %s73 = sphi 0, %s59
    %s81 = sphi 0, %s83
    %s84 = sphi 0, %s81
    %s85 = sphi 0, %s84
    %s101 = sphi 0, %s85
  $region4: #{multi_head_attention.4} parent=0 // loop_header_branch
    %11 = sbr.rel (%p9) target = $region8
  $region5: #{multi_head_attention.4} parent=0 // loop_body
    %s13 = ssub.s32 %s8, 1
    %s14 = ssub.s32 %s8, 2
    %s21 = sadd.s32 1, %s16
    %p22 = scmp.ge.s32.totalorder %s21, 1
    %s23 = scalar_select %p22, 0, %s21
    %s24 = sadd.s32 1, %s15
    %s25 = scalar_select %p22, %s24, %s15
    %p26 = scmp.ge.s32.totalorder %s25, 2
    %s27 = scalar_select %p26, 0, %s25
    %s28 = ssub.s32 %s15, %s27
    %s29 = ssub.s32 %s16, %s23
    %s30 = sor.u32 %s28, %s29
    %p31 = scmp.eq.s32.totalorder %s30, 0
    %s33 = sadd.s32 %s32, 1
    %s34 = scalar_select %p31, %s32, %s33
    %p37 = pneg %p31
    %p38 = scmp.eq.s32.totalorder %s8, 1
    %p39 = por %p37, %p38
    %p40 = scmp.ne.s32.totalorder %s32, %s35
    %p41 = scmp.eq.s32.totalorder %s8, 0
    %p42 = por %p40, %p41
    %p43 = scmp.ne.s32.totalorder %s32, %s35
    %p44 = scmp.eq.s32.totalorder %s13, 1
    %p45 = por %p43, %p44
    %p46 = scmp.ne.s32.totalorder %s35, %s36
    %p47 = scmp.eq.s32.totalorder %s13, 0
    %p48 = por %p46, %p47
    %p49 = scmp.ne.s32.totalorder %s35, %s36
    %p50 = scmp.eq.s32.totalorder %s14, 1
    %p51 = por %p49, %p50
    %p53 = scmp.ne.s32.totalorder %s36, %s52
    %p54 = scmp.eq.s32.totalorder %s14, 0
    %p55 = por %p53, %p54
    %s57 = sadd.s32 %s56, 1
    %p60 = scmp.eq.s32.totalorder %s8, 1
    %p61 = scmp.ne.s32.totalorder %s56, %s58
    %p62 = scmp.eq.s32.totalorder %s8, 0
    %p63 = por %p61, %p62
    %p64 = scmp.ne.s32.totalorder %s56, %s58
    %p65 = scmp.eq.s32.totalorder %s13, 1
    %p66 = por %p64, %p65
    %p67 = scmp.ne.s32.totalorder %s58, %s59
    %p68 = scmp.eq.s32.totalorder %s13, 0
    %p69 = por %p67, %p68
    %p70 = scmp.ne.s32.totalorder %s58, %s59
    %p71 = scmp.eq.s32.totalorder %s14, 1
    %p72 = por %p70, %p71
    %p74 = scmp.ne.s32.totalorder %s59, %s73
    %p75 = scmp.eq.s32.totalorder %s14, 0
    %p76 = por %p74, %p75
    %s77 = ssub.s32 %s15, %s27
    %s78 = ssub.s32 %s16, %s23
    %s79 = sor.u32 %s77, %s78
    %p80 = scmp.eq.s32.totalorder %s79, 0
    %s82 = sadd.s32 %s81, 1
    %s83 = scalar_select %p80, %s81, %s82
    %p86 = pneg %p80
    %p87 = scmp.eq.s32.totalorder %s8, 1
    %p88 = por %p86, %p87
    %p89 = scmp.ne.s32.totalorder %s81, %s84
    %p90 = scmp.eq.s32.totalorder %s8, 0
    %p91 = por %p89, %p90
    %p92 = scmp.ne.s32.totalorder %s81, %s84
    %p93 = scmp.eq.s32.totalorder %s13, 1
    %p94 = por %p92, %p93
    %p95 = scmp.ne.s32.totalorder %s84, %s85
    %p96 = scmp.eq.s32.totalorder %s13, 0
    %p97 = por %p95, %p96
    %p98 = scmp.ne.s32.totalorder %s84, %s85
    %p99 = scmp.eq.s32.totalorder %s14, 1
    %p100 = por %p98, %p99
    %p102 = scmp.ne.s32.totalorder %s85, %s101
    %p103 = scmp.eq.s32.totalorder %s14, 0
    %p104 = por %p102, %p103
    %p105 = scmp.le.s32.totalorder 1, %s8
    %p106 = scmp.lt.s32.totalorder %s8, 3
    %p107 = pnand %p105, %p106
    %p108 = pneg %p107
    // Predicated region
    $region9: #{multi_head_attention.4} parent=5 // pred_check
      _
    $region10: #{multi_head_attention.4} parent=5 // pred_check_branch
      %110 = sbr.rel (%p107) target = $region12
    $region11: #{multi_head_attention.4} parent=5 // pred_region
      %s111 = ssub.s32 %s8, 1
      // Predicated region
      $region13: #{multi_head_attention.4} parent=11 // pred_check
        %p112 = pneg %p69
      $region14: #{multi_head_attention.4} parent=11 // pred_check_branch
        %114 = sbr.rel (%p112) target = $region16
      $region15: #{multi_head_attention.4} parent=11 // pred_region
        _
      $region16: #{multi_head_attention.4} parent=11 // pred_fallthru
        _
    $region12: #{multi_head_attention.4} parent=5 // pred_fallthru
      _
    %p115 = scmp.lt.s32.totalorder %s8, 2
    // Predicated region
    $region17: #{multi_head_attention.4} parent=5 // pred_check
      %p116 = pneg %p115
    $region18: #{multi_head_attention.4} parent=5 // pred_check_branch
      %118 = sbr.rel (%p116) target = $region20
    $region19: #{multi_head_attention.4} parent=5 // pred_region
      // Predicated region
      $region21: #{multi_head_attention.4} parent=19 // pred_check
        %p119 = pneg %p42
      $region22: #{multi_head_attention.4} parent=19 // pred_check_branch
        %121 = sbr.rel (%p119) target = $region24
      $region23: #{multi_head_attention.4} parent=19 // pred_region
        %p122 = scmp.lt.s32.totalorder %s15, 1
        %s123 = scalar_select %p122, %s15, 1
        %p124 = scmp.lt.s32.totalorder %s16, 0
        %s125 = scalar_select %p124, %s16, 0
        %s126 = sadd.s32 %s125, %s123
        %s127 = smul.addr %s126, 4
        %s128 = scalar_lea.vmem %s0, %s127
      $region24: #{multi_head_attention.4} parent=19 // pred_fallthru
        _
    $region20: #{multi_head_attention.4} parent=5 // pred_fallthru
      _
    %p129 = scmp.le.s32.totalorder 1, %s8
    %p130 = scmp.lt.s32.totalorder %s8, 3
    %p131 = pnand %p129, %p130
    %p132 = pneg %p131
    // Predicated region
    $region25: #{multi_head_attention.4} parent=5 // pred_check
      _
    $region26: #{multi_head_attention.4} parent=5 // pred_check_branch
      %134 = sbr.rel (%p131) target = $region28
    $region27: #{multi_head_attention.4} parent=5 // pred_region
      %s135 = ssub.s32 %s8, 1
      %p136 = scmp.lt.s32.totalorder %s17, 1
      %s137 = scalar_select %p136, %s17, 1
      %p138 = scmp.lt.s32.totalorder %s18, 0
      %s139 = scalar_select %p138, %s18, 0
      %s140 = sadd.s32 %s139, %s137
      %s141 = smul.addr %s140, 4
      %s142 = scalar_lea.vmem %s0, %s141
      %p143 = pneg %p48
      %p144 = pneg %p45
      %p145 = pneg %p69
      %p146 = pneg %p66
      %p147 = pneg %p97
      %p148 = pneg %p94
      %p149 = scmp.lt.s32.totalorder %s17, 1
      %s150 = scalar_select %p149, %s17, 1
      %p151 = scmp.lt.s32.totalorder %s18, 0
      %s152 = scalar_select %p151, %s18, 0
      %s153 = smul.addr %s150, 4
      %s154 = sadd.s32 %s152, %s153
      %s155 = smul.addr %s154, 4
      %s156 = scalar_lea.vmem %s2, %s155
      %p157 = scmp.lt.s32.totalorder %s17, 1
      %s158 = scalar_select %p157, %s17, 1
      %p159 = scmp.lt.s32.totalorder %s18, 0
      %s160 = scalar_select %p159, %s18, 0
      %s161 = sadd.s32 %s160, %s158
      %s162 = smul.addr %s161, 4
      %s163 = scalar_lea.vmem %s0, %s162
      %p164 = scmp.lt.s32.totalorder %s17, 1
      %s165 = scalar_select %p164, %s17, 1
      %p166 = scmp.lt.s32.totalorder %s18, 0
      %s167 = scalar_select %p166, %s18, 0
      %s168 = smul.addr %s165, 4
      %s169 = sadd.s32 %s167, %s168
      %s170 = smul.addr %s169, 4
      %s171 = scalar_lea.vmem %s2, %s170
      %v173 = vld [vmem:[%s163] sm:$0xf]
      %v174 = vld [vmem:[%s1] sm:$0xf]
      %v175 = vld [vmem:[%s1 + $0x4] sm:$0xf]
      %v176 = vld [vmem:[%s1 + $0x8] sm:$0xf]
      %v177 = vld [vmem:[%s1 + $0xc] sm:$0xf]
      %v182 = vunpack.c.l.b16 %v174
      %v183 = vunpack.c.l.b16 %v175
      %v184 = vunpack.c.l.b16 %v176
      %v185 = vunpack.c.l.b16 %v177
      %v186 = vpack.c.b16 %v183, %v182
      %v187 = vpack.c.b16 %v185, %v184
      %vm190 = vcmask 261120
      %v192 = vsel %vm190, %v173, 0
      %194 = vmatpush.bf16.msra.mxu0 0
      %195 = vmatpush.bf16.msra.mxu0 0
      %196 = vmatpush.bf16.msra.mxu0 0
      %197 = vmatpush.bf16.msra.mxu0 0
      %198 = vmatpush.bf16.msra.mxu0 0
      %199 = vmatpush.bf16.msra.mxu0 0
      %200 = vmatpush.bf16.msra.mxu0 %v187
      %201 = vmatpush.bf16.msra.mxu0 %v186
      %202 = vmatmul.bf16.gmra.mxu0 %v192
      %v203 = vpop.f32.mrf.mxu0
      %v204 = vadd.f32 0.0, %v203
      %v205 = vpop.f32.mrf.mxu0
      %206 = vdwg.mxu0
      %v207 = vpack.c.bf16 %v204, %v204
      %vm208 = vcmask 60416
      %209 = vst.msk [vmem:[%s171] sm:$0xf] %vm208, %v207
      %211 = vrot.lane.b32.xlu0 %v207, 120
      %v212 = vpop.permute.xlu0 %211
      %s214 = scalar_lea.vmem %s171, 4
      %215 = vst.msk [vmem:[%s214] sm:$0xf] %vm208, %v212
      %216 = vrot.lane.b32.xlu0 %v207, 112
      %v217 = vpop.permute.xlu0 %216
      %s219 = scalar_lea.vmem %s171, 8
      %220 = vst.msk [vmem:[%s219] sm:$0xf] %vm208, %v217
      %221 = vrot.lane.b32.xlu0 %v207, 104
      %v222 = vpop.permute.xlu0 %221
      %s224 = scalar_lea.vmem %s171, 12
      %225 = vst.msk [vmem:[%s224] sm:$0xf] %vm208, %v222
      %p226 = scmp.lt.s32.totalorder %s17, 1
      %s227 = scalar_select %p226, %s17, 1
      %p228 = scmp.lt.s32.totalorder %s18, 0
      %s229 = scalar_select %p228, %s18, 0
      %s230 = smul.addr %s227, 4
      %s231 = sadd.s32 %s229, %s230
      %s232 = smul.addr %s231, 4
      %s233 = scalar_lea.vmem %s2, %s232
      // Predicated region
      $region29: #{multi_head_attention.4} parent=27 // pred_check
        %p234 = pneg %p94
      $region30: #{multi_head_attention.4} parent=27 // pred_check_branch
        %236 = sbr.rel (%p234) target = $region32
      $region31: #{multi_head_attention.4} parent=27 // pred_region
        _
      $region32: #{multi_head_attention.4} parent=27 // pred_fallthru
        _
    $region28: #{multi_head_attention.4} parent=5 // pred_fallthru
      _
    %p237 = scmp.le.s32.totalorder 2, %s8
    // Predicated region
    $region33: #{multi_head_attention.4} parent=5 // pred_check
      %p238 = pneg %p237
    $region34: #{multi_head_attention.4} parent=5 // pred_check_branch
      %240 = sbr.rel (%p238) target = $region36
    $region35: #{multi_head_attention.4} parent=5 // pred_region
      %s241 = ssub.s32 %s8, 2
      // Predicated region
      $region37: #{multi_head_attention.4} parent=35 // pred_check
        %p242 = pneg %p100
      $region38: #{multi_head_attention.4} parent=35 // pred_check_branch
        %244 = sbr.rel (%p242) target = $region40
      $region39: #{multi_head_attention.4} parent=35 // pred_region
        %p245 = scmp.lt.s32.totalorder %s19, 1
        %s246 = scalar_select %p245, %s19, 1
        %p247 = scmp.lt.s32.totalorder %s20, 0
        %s248 = scalar_select %p247, %s20, 0
        %s249 = smul.addr %s246, 4
        %s250 = sadd.s32 %s248, %s249
        %s251 = smul.addr %s250, 4
        %s252 = scalar_lea.vmem %s2, %s251
      $region40: #{multi_head_attention.4} parent=35 // pred_fallthru
        _
    $region36: #{multi_head_attention.4} parent=5 // pred_fallthru
      _
  $region6: #{multi_head_attention.4} parent=0 // loop_footer
    %s12 = sadd.s32 1, %s8
  $region7: #{multi_head_attention.4} parent=0 // loop_footer_branch
    %7 = sbr.rel target = $region3
  $region8: #{multi_head_attention.4} parent=0 // loop_exit
    _

// kernel: multi_head_attention.7
$region0: #{multi_head_attention.7}
  #allocation0 [shape = 'u32[]', space=smem, size = 0x4, offset = 0x4, fixed_abs, tag = 'smem constant byte address 0x4 - core index']
  #allocation1 [shape = 'u32[72,128]{1,0:T(1,128)}', space=vmem, size = 0x9000, scoped, tag = 'internal scratch']
  #allocation2 [shape = 'f32[4,8,1]{2,1,0:T(8,128)}', space=vmem, size = 0x4000, scoped, tag = 'scratch operand']
  #allocation3 [shape = 'f32[4,8,1]{2,1,0:T(8,128)}', space=vmem, size = 0x4000, scoped, tag = 'scratch operand']
  #allocation4 [shape = 'f32[4,8,8]{2,1,0:T(8,128)}', space=vmem, size = 0x4000, scoped, tag = 'scratch operand']
  #allocation5 [shape = 'bf16[8,32]{1,0:T(8,128)(2,1)}', space=vmem, size = 0x800, scoped, tag = 'scratch operand']
  %s0 = inlined_call_operand.vmem [shape: bf16[2,4,8,8], index: 0, kind: input, shape index: {}]
  %s1 = inlined_call_operand.vmem [shape: bf16[2,4,8,8], index: 1, kind: input, shape index: {}]
  %s2 = inlined_call_operand.vmem [shape: bf16[2,4,8,8], index: 2, kind: input, shape index: {}]
  %s3 = inlined_call_operand.vmem [shape: bf16[32,32], index: 3, kind: input, shape index: {}]
  %s4 = inlined_call_operand.vmem [shape: f32[1,32], index: 4, kind: input, shape index: {}]
  %s5 = inlined_call_operand.hbm [shape: f32[2,8,32], index: 5, kind: output, shape index: {}]
  %s6 = sld [smem:[#allocation0]]
  $region61: #{multi_head_attention.7} parent=0
    _
  %s8 = ssub.s32 1, %s6
  %s9 = scalar_select 0, %s8, %s6
  $region1: #{multi_head_attention.7} parent=0
    #allocation6 [shape = 'u8[8192]{0}', space=vmem, size = 0x2000, scoped, tag = 'output window, operand 0']
    #allocation7 [shape = 's32[2]{0}', space=sflag, size = 0x8, scoped, tag = 'scoped memory for multi_head_attention.7']
    %10 = vsyncpa [#allocation7], 0
    %s11 = scalar_lea.sflag [#allocation7], 1
    %12 = vsyncpa %s11, 0
    loop: start=0, step=1, limit=4
    $region2: #{multi_head_attention.7} parent=1 // loop_pre_header
      _
    $region3: #{multi_head_attention.7} parent=1 // loop_header
      %s14 = sphi 0, %s18
      %p15 = scmp.ge.s32.totalorder %s14, 4
      %s21 = sphi 0, %s40
      %s22 = sphi 0, %s36
      %s23 = sphi 0, %s32
      %s24 = sphi 0, %s21
      %s25 = sphi 0, %s22
      %s26 = sphi 0, %s23
      %s27 = sphi 0, %s24
      %s28 = sphi 0, %s25
      %s29 = sphi 0, %s26
      %s45 = sphi 0, %s47
      %s48 = sphi 0, %s45
      %s49 = sphi 0, %s48
      %s65 = sphi 0, %s49
      %s73 = sphi 0, %s75
      %s76 = sphi 0, %s73
      %s77 = sphi 0, %s76
      %s93 = sphi 0, %s77
      %s101 = sphi 0, %s103
      %s104 = sphi 0, %s101
      %s105 = sphi 0, %s104
      %s121 = sphi 0, %s105
      %s125 = sphi 0, %s125
      %s127 = sphi 0, %s125
      %s128 = sphi 0, %s127
      %s142 = sphi 0, %s128
      %s146 = sphi 0, %s146
      %s148 = sphi 0, %s146
      %s149 = sphi 0, %s148
      %s163 = sphi 0, %s149
      %s171 = sphi 0, %s173
      %s174 = sphi 0, %s171
      %s175 = sphi 0, %s174
      %s191 = sphi 0, %s175
    $region4: #{multi_head_attention.7} parent=1 // loop_header_branch
      %17 = sbr.rel (%p15) target = $region8
    $region5: #{multi_head_attention.7} parent=1 // loop_body
      %s19 = ssub.s32 %s14, 1
      %s20 = ssub.s32 %s14, 2
      %s30 = sadd.s32 1, %s23
      %p31 = scmp.ge.s32.totalorder %s30, 1
      %s32 = scalar_select %p31, 0, %s30
      %s33 = sadd.s32 1, %s22
      %s34 = scalar_select %p31, %s33, %s22
      %p35 = scmp.ge.s32.totalorder %s34, 1
      %s36 = scalar_select %p35, 0, %s34
      %s37 = sadd.s32 1, %s21
      %s38 = scalar_select %p35, %s37, %s21
      %p39 = scmp.ge.s32.totalorder %s38, 2
      %s40 = scalar_select %p39, 0, %s38
      %s41 = ssub.s32 %s21, %s40
      %s42 = ssub.s32 %s22, %s36
      %s43 = sor.u32 %s41, %s42
      %p44 = scmp.eq.s32.totalorder %s43, 0
      %s46 = sadd.s32 %s45, 1
      %s47 = scalar_select %p44, %s45, %s46
      %p50 = pneg %p44
      %p51 = scmp.eq.s32.totalorder %s14, 1
      %p52 = por %p50, %p51
      %p53 = scmp.ne.s32.totalorder %s45, %s48
      %p54 = scmp.eq.s32.totalorder %s14, 0
      %p55 = por %p53, %p54
      %p56 = scmp.ne.s32.totalorder %s45, %s48
      %p57 = scmp.eq.s32.totalorder %s19, 1
      %p58 = por %p56, %p57
      %p59 = scmp.ne.s32.totalorder %s48, %s49
      %p60 = scmp.eq.s32.totalorder %s19, 0
      %p61 = por %p59, %p60
      %p62 = scmp.ne.s32.totalorder %s48, %s49
      %p63 = scmp.eq.s32.totalorder %s20, 1
      %p64 = por %p62, %p63
      %p66 = scmp.ne.s32.totalorder %s49, %s65
      %p67 = scmp.eq.s32.totalorder %s20, 0
      %p68 = por %p66, %p67
      %s69 = ssub.s32 %s21, %s40
      %s70 = ssub.s32 %s23, %s32
      %s71 = sor.u32 %s69, %s70
      %p72 = scmp.eq.s32.totalorder %s71, 0
      %s74 = sadd.s32 %s73, 1
      %s75 = scalar_select %p72, %s73, %s74
      %p78 = pneg %p72
      %p79 = scmp.eq.s32.totalorder %s14, 1
      %p80 = por %p78, %p79
      %p81 = scmp.ne.s32.totalorder %s73, %s76
      %p82 = scmp.eq.s32.totalorder %s14, 0
      %p83 = por %p81, %p82
      %p84 = scmp.ne.s32.totalorder %s73, %s76
      %p85 = scmp.eq.s32.totalorder %s19, 1
      %p86 = por %p84, %p85
      %p87 = scmp.ne.s32.totalorder %s76, %s77
      %p88 = scmp.eq.s32.totalorder %s19, 0
      %p89 = por %p87, %p88
      %p90 = scmp.ne.s32.totalorder %s76, %s77
      %p91 = scmp.eq.s32.totalorder %s20, 1
      %p92 = por %p90, %p91
      %p94 = scmp.ne.s32.totalorder %s77, %s93
      %p95 = scmp.eq.s32.totalorder %s20, 0
      %p96 = por %p94, %p95
      %s97 = ssub.s32 %s21, %s40
      %s98 = ssub.s32 %s23, %s32
      %s99 = sor.u32 %s97, %s98
      %p100 = scmp.eq.s32.totalorder %s99, 0
      %s102 = sadd.s32 %s101, 1
      %s103 = scalar_select %p100, %s101, %s102
      %p106 = pneg %p100
      %p107 = scmp.eq.s32.totalorder %s14, 1
      %p108 = por %p106, %p107
      %p109 = scmp.ne.s32.totalorder %s101, %s104
      %p110 = scmp.eq.s32.totalorder %s14, 0
      %p111 = por %p109, %p110
      %p112 = scmp.ne.s32.totalorder %s101, %s104
      %p113 = scmp.eq.s32.totalorder %s19, 1
      %p114 = por %p112, %p113
      %p115 = scmp.ne.s32.totalorder %s104, %s105
      %p116 = scmp.eq.s32.totalorder %s19, 0
      %p117 = por %p115, %p116
      %p118 = scmp.ne.s32.totalorder %s104, %s105
      %p119 = scmp.eq.s32.totalorder %s20, 1
      %p120 = por %p118, %p119
      %p122 = scmp.ne.s32.totalorder %s105, %s121
      %p123 = scmp.eq.s32.totalorder %s20, 0
      %p124 = por %p122, %p123
      %s126 = sadd.s32 %s125, 1
      %p129 = scmp.eq.s32.totalorder %s14, 1
      %p130 = scmp.ne.s32.totalorder %s125, %s127
      %p131 = scmp.eq.s32.totalorder %s14, 0
      %p132 = por %p130, %p131
      %p133 = scmp.ne.s32.totalorder %s125, %s127
      %p134 = scmp.eq.s32.totalorder %s19, 1
      %p135 = por %p133, %p134
      %p136 = scmp.ne.s32.totalorder %s127, %s128
      %p137 = scmp.eq.s32.totalorder %s19, 0
      %p138 = por %p136, %p137
      %p139 = scmp.ne.s32.totalorder %s127, %s128
      %p140 = scmp.eq.s32.totalorder %s20, 1
      %p141 = por %p139, %p140
      %p143 = scmp.ne.s32.totalorder %s128, %s142
      %p144 = scmp.eq.s32.totalorder %s20, 0
      %p145 = por %p143, %p144
      %s147 = sadd.s32 %s146, 1
      %p150 = scmp.eq.s32.totalorder %s14, 1
      %p151 = scmp.ne.s32.totalorder %s146, %s148
      %p152 = scmp.eq.s32.totalorder %s14, 0
      %p153 = por %p151, %p152
      %p154 = scmp.ne.s32.totalorder %s146, %s148
      %p155 = scmp.eq.s32.totalorder %s19, 1
      %p156 = por %p154, %p155
      %p157 = scmp.ne.s32.totalorder %s148, %s149
      %p158 = scmp.eq.s32.totalorder %s19, 0
      %p159 = por %p157, %p158
      %p160 = scmp.ne.s32.totalorder %s148, %s149
      %p161 = scmp.eq.s32.totalorder %s20, 1
      %p162 = por %p160, %p161
      %p164 = scmp.ne.s32.totalorder %s149, %s163
      %p165 = scmp.eq.s32.totalorder %s20, 0
      %p166 = por %p164, %p165
      %s167 = ssub.s32 %s21, %s40
      %s168 = ssub.s32 %s22, %s36
      %s169 = sor.u32 %s167, %s168
      %p170 = scmp.eq.s32.totalorder %s169, 0
      %s172 = sadd.s32 %s171, 1
      %s173 = scalar_select %p170, %s171, %s172
      %p176 = pneg %p170
      %p177 = scmp.eq.s32.totalorder %s14, 1
      %p178 = por %p176, %p177
      %p179 = scmp.ne.s32.totalorder %s171, %s174
      %p180 = scmp.eq.s32.totalorder %s14, 0
      %p181 = por %p179, %p180
      %p182 = scmp.ne.s32.totalorder %s171, %s174
      %p183 = scmp.eq.s32.totalorder %s19, 1
      %p184 = por %p182, %p183
      %p185 = scmp.ne.s32.totalorder %s174, %s175
      %p186 = scmp.eq.s32.totalorder %s19, 0
      %p187 = por %p185, %p186
      %p188 = scmp.ne.s32.totalorder %s174, %s175
      %p189 = scmp.eq.s32.totalorder %s20, 1
      %p190 = por %p188, %p189
      %p192 = scmp.ne.s32.totalorder %s175, %s191
      %p193 = scmp.eq.s32.totalorder %s20, 0
      %p194 = por %p192, %p193
      %p195 = scmp.le.s32.totalorder 1, %s14
      %p196 = scmp.lt.s32.totalorder %s14, 3
      %p197 = pnand %p195, %p196
      %p198 = pneg %p197
      // Predicated region
      $region9: #{multi_head_attention.7} parent=5 // pred_check
        _
      $region10: #{multi_head_attention.7} parent=5 // pred_check_branch
        %200 = sbr.rel (%p197) target = $region12
      $region11: #{multi_head_attention.7} parent=5 // pred_region
        %s201 = ssub.s32 %s14, 1
        // Predicated region
        $region13: #{multi_head_attention.7} parent=11 // pred_check
          %p202 = pneg %p138
        $region14: #{multi_head_attention.7} parent=11 // pred_check_branch
          %204 = sbr.rel (%p202) target = $region16
        $region15: #{multi_head_attention.7} parent=11 // pred_region
          _
        $region16: #{multi_head_attention.7} parent=11 // pred_fallthru
          _
        // Predicated region
        $region17: #{multi_head_attention.7} parent=11 // pred_check
          %p205 = pneg %p159
        $region18: #{multi_head_attention.7} parent=11 // pred_check_branch
          %207 = sbr.rel (%p205) target = $region20
        $region19: #{multi_head_attention.7} parent=11 // pred_region
          _
        $region20: #{multi_head_attention.7} parent=11 // pred_fallthru
          _
      $region12: #{multi_head_attention.7} parent=5 // pred_fallthru
        _
      %p208 = scmp.lt.s32.totalorder %s14, 2
      // Predicated region
      $region21: #{multi_head_attention.7} parent=5 // pred_check
        %p209 = pneg %p208
      $region22: #{multi_head_attention.7} parent=5 // pred_check_branch
        %211 = sbr.rel (%p209) target = $region24
      $region23: #{multi_head_attention.7} parent=5 // pred_region
        // Predicated region
        $region25: #{multi_head_attention.7} parent=23 // pred_check
          %p212 = pneg %p55
        $region26: #{multi_head_attention.7} parent=23 // pred_check_branch
          %214 = sbr.rel (%p212) target = $region28
        $region27: #{multi_head_attention.7} parent=23 // pred_region
          %p215 = scmp.lt.s32.totalorder %s21, 1
          %s216 = scalar_select %p215, %s21, 1
          %p217 = scmp.lt.s32.totalorder %s22, 0
          %s218 = scalar_select %p217, %s22, 0
          %s219 = smul.addr %s216, 4
          %s220 = sadd.s32 %s218, %s219
          %s221 = smul.addr %s220, 4
          %s222 = scalar_lea.vmem %s0, %s221
        $region28: #{multi_head_attention.7} parent=23 // pred_fallthru
          _
        // Predicated region
        $region29: #{multi_head_attention.7} parent=23 // pred_check
          %p223 = pneg %p83
        $region30: #{multi_head_attention.7} parent=23 // pred_check_branch
          %225 = sbr.rel (%p223) target = $region32
        $region31: #{multi_head_attention.7} parent=23 // pred_region
          %p226 = scmp.lt.s32.totalorder %s21, 1
          %s227 = scalar_select %p226, %s21, 1
          %p228 = scmp.lt.s32.totalorder %s23, 0
          %s229 = scalar_select %p228, %s23, 0
          %s230 = smul.addr %s227, 4
          %s231 = sadd.s32 %s229, %s230
          %s232 = smul.addr %s231, 4
          %s233 = scalar_lea.vmem %s1, %s232
        $region32: #{multi_head_attention.7} parent=23 // pred_fallthru
          _
        // Predicated region
        $region33: #{multi_head_attention.7} parent=23 // pred_check
          %p234 = pneg %p111
        $region34: #{multi_head_attention.7} parent=23 // pred_check_branch
          %236 = sbr.rel (%p234) target = $region36
        $region35: #{multi_head_attention.7} parent=23 // pred_region
          %p237 = scmp.lt.s32.totalorder %s21, 1
          %s238 = scalar_select %p237, %s21, 1
          %p239 = scmp.lt.s32.totalorder %s23, 0
          %s240 = scalar_select %p239, %s23, 0
          %s241 = smul.addr %s238, 4
          %s242 = sadd.s32 %s240, %s241
          %s243 = smul.addr %s242, 4
          %s244 = scalar_lea.vmem %s2, %s243
        $region36: #{multi_head_attention.7} parent=23 // pred_fallthru
          _
      $region24: #{multi_head_attention.7} parent=5 // pred_fallthru
        _
      %p245 = scmp.le.s32.totalorder 1, %s14
      %p246 = scmp.lt.s32.totalorder %s14, 3
      %p247 = pnand %p245, %p246
      %p248 = pneg %p247
      // Predicated region
      $region37: #{multi_head_attention.7} parent=5 // pred_check
        _
      $region38: #{multi_head_attention.7} parent=5 // pred_check_branch
        %250 = sbr.rel (%p247) target = $region40
      $region39: #{multi_head_attention.7} parent=5 // pred_region
        %s251 = ssub.s32 %s14, 1
        %p252 = scmp.lt.s32.totalorder %s24, 1
        %s253 = scalar_select %p252, %s24, 1
        %p254 = scmp.lt.s32.totalorder %s25, 0
        %s255 = scalar_select %p254, %s25, 0
        %s256 = smul.addr %s253, 4
        %s257 = sadd.s32 %s255, %s256
        %s258 = smul.addr %s257, 4
        %s259 = scalar_lea.vmem %s0, %s258
        %p260 = pneg %p61
        %p261 = pneg %p58
        %p262 = scmp.lt.s32.totalorder %s24, 1
        %s263 = scalar_select %p262, %s24, 1
        %p264 = scmp.lt.s32.totalorder %s26, 0
        %s265 = scalar_select %p264, %s26, 0
        %s266 = smul.addr %s263, 4
        %s267 = sadd.s32 %s265, %s266
        %s268 = smul.addr %s267, 4
        %s269 = scalar_lea.vmem %s1, %s268
        %p270 = pneg %p89
        %p271 = pneg %p86
        %p272 = scmp.lt.s32.totalorder %s24, 1
        %s273 = scalar_select %p272, %s24, 1
        %p274 = scmp.lt.s32.totalorder %s26, 0
        %s275 = scalar_select %p274, %s26, 0
        %s276 = smul.addr %s273, 4
        %s277 = sadd.s32 %s275, %s276
        %s278 = smul.addr %s277, 4
        %s279 = scalar_lea.vmem %s2, %s278
        %p280 = pneg %p117
        %p281 = pneg %p114
        %p282 = pneg %p138
        %p283 = pneg %p135
        %p284 = pneg %p159
        %p285 = pneg %p156
        %p286 = pneg %p187
        %p287 = pneg %p184
        %s288 = sand.u32 %s174, 1
        %s289 = scalar_lea.sflag [#allocation7], %s288
        %s290 = sand.u32 %s174, 1
        %s291 = smul.addr %s290, 8
        %s292 = scalar_lea.vmem [#allocation6], %s291
        %p293 = scmp.lt.s32.totalorder %s24, 1
        %s294 = scalar_select %p293, %s24, 1
        %p295 = scmp.lt.s32.totalorder %s25, 0
        %s296 = scalar_select %p295, %s25, 0
        %s297 = smul.addr %s294, 4
        %s298 = sadd.s32 %s296, %s297
        %s299 = smul.addr %s298, 4
        %s300 = scalar_lea.vmem %s0, %s299
        %p301 = scmp.lt.s32.totalorder %s24, 1
        %s302 = scalar_select %p301, %s24, 1
        %p303 = scmp.lt.s32.totalorder %s26, 0
        %s304 = scalar_select %p303, %s26, 0
        %s305 = smul.addr %s302, 4
        %s306 = sadd.s32 %s304, %s305
        %s307 = smul.addr %s306, 4
        %s308 = scalar_lea.vmem %s1, %s307
        %p309 = scmp.lt.s32.totalorder %s24, 1
        %s310 = scalar_select %p309, %s24, 1
        %p311 = scmp.lt.s32.totalorder %s26, 0
        %s312 = scalar_select %p311, %s26, 0
        %s313 = smul.addr %s310, 4
        %s314 = sadd.s32 %s312, %s313
        %s315 = smul.addr %s314, 4
        %s316 = scalar_lea.vmem %s2, %s315
        %p318 = scmp.eq.s32.totalorder %s26, 0
        // Predicated region
        $region41: #{multi_head_attention.7} parent=39 // pred_check
          %p319 = pneg %p318
        $region42: #{multi_head_attention.7} parent=39 // pred_check_branch
          %321 = sbr.rel (%p319) target = $region44
        $region43: #{multi_head_attention.7} parent=39 // pred_region
          %vm322 = vcmask 7168
          %323 = vst.msk [vmem:[#allocation2] sm:$0xff] %vm322, -inf
          %324 = vst.msk [vmem:[#allocation2 + $0x8] sm:$0xff] %vm322, -inf
          %325 = vst.msk [vmem:[#allocation2 + $0x10] sm:$0xff] %vm322, -inf
          %326 = vst.msk [vmem:[#allocation2 + $0x18] sm:$0xff] %vm322, -inf
          %327 = vst.msk [vmem:[#allocation3] sm:$0xff] %vm322, 0.0
          %328 = vst.msk [vmem:[#allocation3 + $0x8] sm:$0xff] %vm322, 0.0
          %329 = vst.msk [vmem:[#allocation3 + $0x10] sm:$0xff] %vm322, 0.0
          %330 = vst.msk [vmem:[#allocation3 + $0x18] sm:$0xff] %vm322, 0.0
          %vm331 = vcmask 64512
          %332 = vst.msk [vmem:[#allocation4] sm:$0xff] %vm331, 0.0
          %333 = vst.msk [vmem:[#allocation4 + $0x8] sm:$0xff] %vm331, 0.0
          %334 = vst.msk [vmem:[#allocation4 + $0x10] sm:$0xff] %vm331, 0.0
          %335 = vst.msk [vmem:[#allocation4 + $0x18] sm:$0xff] %vm331, 0.0
        $region44: #{multi_head_attention.7} parent=39 // pred_fallthru
          _
        %v336 = vld [vmem:[%s300] sm:$0xf]
        %v337 = vld [vmem:[%s300 + $0x4] sm:$0xf]
        %v338 = vld [vmem:[%s300 + $0x8] sm:$0xf]
        %v339 = vld [vmem:[%s300 + $0xc] sm:$0xf]
        %v340 = vld [vmem:[%s308] sm:$0xf]
        %v341 = vld [vmem:[%s308 + $0x4] sm:$0xf]
        %v342 = vld [vmem:[%s308 + $0x8] sm:$0xf]
        %v343 = vld [vmem:[%s308 + $0xc] sm:$0xf]
        %v344 = vld [vmem:[%s316] sm:$0xf]
        %v345 = vld [vmem:[%s316 + $0x4] sm:$0xf]
        %v346 = vld [vmem:[%s316 + $0x8] sm:$0xf]
        %v347 = vld [vmem:[%s316 + $0xc] sm:$0xf]
        %vm348 = vcmask 64512
        %v350 = vsel %vm348, %v336, 0
        %v353 = vsel %vm348, %v340, 0
        %355 = vmatpush.bf16.xpose.msra.mxu0 0
        %356 = vmatpush.bf16.xpose.msra.mxu0 0
        %357 = vmatpush.bf16.xpose.msra.mxu0 0
        %358 = vmatpush.bf16.xpose.msra.mxu0 0
        %359 = vmatpush.bf16.xpose.msra.mxu0 0
        %360 = vmatpush.bf16.xpose.msra.mxu0 0
        %361 = vmatpush.bf16.xpose.msra.mxu0 0
        %362 = vmatpush.bf16.xpose.msra.mxu0 %v353
        %363 = vmatmul.bf16.gmra.mxu0 %v350
        %v364 = vpop.f32.mrf.mxu0
        %v365 = vadd.f32 0.0, %v364
        %v366 = vpop.f32.mrf.mxu0
        %367 = vdwg.mxu0
        %v369 = vsel %vm348, %v337, 0
        %v372 = vsel %vm348, %v341, 0
        %374 = vmatpush.bf16.xpose.msra.mxu0 0
        %375 = vmatpush.bf16.xpose.msra.mxu0 0
        %376 = vmatpush.bf16.xpose.msra.mxu0 0
        %377 = vmatpush.bf16.xpose.msra.mxu0 0
        %378 = vmatpush.bf16.xpose.msra.mxu0 0
        %379 = vmatpush.bf16.xpose.msra.mxu0 0
        %380 = vmatpush.bf16.xpose.msra.mxu0 0
        %381 = vmatpush.bf16.xpose.msra.mxu0 %v372
        %382 = vmatmul.bf16.gmra.mxu0 %v369
        %v383 = vpop.f32.mrf.mxu0
        %v384 = vadd.f32 0.0, %v383
        %v385 = vpop.f32.mrf.mxu0
        %386 = vdwg.mxu0
        %v388 = vsel %vm348, %v338, 0
        %v391 = vsel %vm348, %v342, 0
        %393 = vmatpush.bf16.xpose.msra.mxu0 0
        %394 = vmatpush.bf16.xpose.msra.mxu0 0
        %395 = vmatpush.bf16.xpose.msra.mxu0 0
        %396 = vmatpush.bf16.xpose.msra.mxu0 0
        %397 = vmatpush.bf16.xpose.msra.mxu0 0
        %398 = vmatpush.bf16.xpose.msra.mxu0 0
        %399 = vmatpush.bf16.xpose.msra.mxu0 0
        %400 = vmatpush.bf16.xpose.msra.mxu0 %v391
        %401 = vmatmul.bf16.gmra.mxu0 %v388
        %v402 = vpop.f32.mrf.mxu0
        %v403 = vadd.f32 0.0, %v402
        %v404 = vpop.f32.mrf.mxu0
        %405 = vdwg.mxu0
        %v407 = vsel %vm348, %v339, 0
        %v410 = vsel %vm348, %v343, 0
        %412 = vmatpush.bf16.xpose.msra.mxu0 0
        %413 = vmatpush.bf16.xpose.msra.mxu0 0
        %414 = vmatpush.bf16.xpose.msra.mxu0 0
        %415 = vmatpush.bf16.xpose.msra.mxu0 0
        %416 = vmatpush.bf16.xpose.msra.mxu0 0
        %417 = vmatpush.bf16.xpose.msra.mxu0 0
        %418 = vmatpush.bf16.xpose.msra.mxu0 0
        %419 = vmatpush.bf16.xpose.msra.mxu0 %v410
        %420 = vmatmul.bf16.gmra.mxu0 %v407
        %v421 = vpop.f32.mrf.mxu0
        %v422 = vadd.f32 0.0, %v421
        %v423 = vpop.f32.mrf.mxu0
        %424 = vdwg.mxu0
        %v425 = vld [vmem:[#allocation2] sm:$0xff]
        %v426 = vld [vmem:[#allocation2 + $0x8] sm:$0xff]
        %v427 = vld [vmem:[#allocation2 + $0x10] sm:$0xff]
        %v428 = vld [vmem:[#allocation2 + $0x18] sm:$0xff]
        %v429 = vsel %vm348, %v365, -inf
        %430 = vmax.xlane.f32.xlu0 %v429
        %v431 = vpop.xlane.xlu0 %430
        %v432 = vsel %vm348, %v384, -inf
        %433 = vmax.xlane.f32.xlu0 %v432
        %v434 = vpop.xlane.xlu0 %433
        %v435 = vsel %vm348, %v403, -inf
        %436 = vmax.xlane.f32.xlu0 %v435
        %v437 = vpop.xlane.xlu0 %436
        %v438 = vsel %vm348, %v422, -inf
        %439 = vmax.xlane.f32.xlu0 %v438
        %v440 = vpop.xlane.xlu0 %439
        %v441 = vmax.f32 %v425, %v431
        %v442 = vmax.f32 %v426, %v434
        %v443 = vmax.f32 %v427, %v437
        %v444 = vmax.f32 %v428, %v440
        %v445 = vsub.f32 %v425, %v441
        %v446 = vsub.f32 %v426, %v442
        %v447 = vsub.f32 %v427, %v443
        %v448 = vsub.f32 %v428, %v444
        %v449 = vmul.f32 %v445, 1.442695
        %v450 = vpow.pop %v449
        %v451 = vmul.f32 %v446, 1.442695
        %v452 = vpow.pop %v451
        %v453 = vmul.f32 %v447, 1.442695
        %v454 = vpow.pop %v453
        %v455 = vmul.f32 %v448, 1.442695
        %v456 = vpow.pop %v455
        %458 = vset.pattern.permute.xlu0 0
        %459 = vperm.xlu0 %458, %v441
        %v460 = vpop.permute.xlu0 %459
        %463 = vset.pattern.permute.xlu0 0
        %464 = vperm.xlu0 %463, %v442
        %v465 = vpop.permute.xlu0 %464
        %468 = vset.pattern.permute.xlu0 0
        %469 = vperm.xlu0 %468, %v443
        %v470 = vpop.permute.xlu0 %469
        %473 = vset.pattern.permute.xlu0 0
        %474 = vperm.xlu0 %473, %v444
        %v475 = vpop.permute.xlu0 %474
        %v477 = vsub.f32 %v365, %v460
        %v478 = vsub.f32 %v384, %v465
        %v479 = vsub.f32 %v403, %v470
        %v480 = vsub.f32 %v422, %v475
        %v481 = vmul.f32 %v477, 1.442695
        %v482 = vpow.pop %v481
        %v483 = vmul.f32 %v478, 1.442695
        %v484 = vpow.pop %v483
        %v485 = vmul.f32 %v479, 1.442695
        %v486 = vpow.pop %v485
        %v487 = vmul.f32 %v480, 1.442695
        %v488 = vpow.pop %v487
        %v489 = vld [vmem:[#allocation3] sm:$0xff]
        %v490 = vld [vmem:[#allocation3 + $0x8] sm:$0xff]
        %v491 = vld [vmem:[#allocation3 + $0x10] sm:$0xff]
        %v492 = vld [vmem:[#allocation3 + $0x18] sm:$0xff]
        %v493 = vmul.f32 %v450, %v489
        %v494 = vmul.f32 %v452, %v490
        %v495 = vmul.f32 %v454, %v491
        %v496 = vmul.f32 %v456, %v492
        %v497 = vsel %vm348, %v482, 0.0
        %498 = vadd.xlane.f32.xlu0 %v497
        %v499 = vpop.xlane.xlu0 %498
        %v500 = vsel %vm348, %v484, 0.0
        %501 = vadd.xlane.f32.xlu0 %v500
        %v502 = vpop.xlane.xlu0 %501
        %v503 = vsel %vm348, %v486, 0.0
        %504 = vadd.xlane.f32.xlu0 %v503
        %v505 = vpop.xlane.xlu0 %504
        %v506 = vsel %vm348, %v488, 0.0
        %507 = vadd.xlane.f32.xlu0 %v506
        %v508 = vpop.xlane.xlu0 %507
        %v509 = vadd.f32 %v493, %v499
        %v510 = vadd.f32 %v494, %v502
        %v511 = vadd.f32 %v495, %v505
        %v512 = vadd.f32 %v496, %v508
        %vm513 = vcmask 7168
        %514 = vst.msk [vmem:[#allocation3] sm:$0xff] %vm513, %v509
        %515 = vst.msk [vmem:[#allocation3 + $0x8] sm:$0xff] %vm513, %v510
        %516 = vst.msk [vmem:[#allocation3 + $0x10] sm:$0xff] %vm513, %v511
        %517 = vst.msk [vmem:[#allocation3 + $0x18] sm:$0xff] %vm513, %v512
        %v518 = vld [vmem:[#allocation4] sm:$0xff]
        %v519 = vld [vmem:[#allocation4 + $0x8] sm:$0xff]
        %v520 = vld [vmem:[#allocation4 + $0x10] sm:$0xff]
        %v521 = vld [vmem:[#allocation4 + $0x18] sm:$0xff]
        %523 = vset.pattern.permute.xlu0 0
        %524 = vperm.xlu0 %523, %v450
        %v525 = vpop.permute.xlu0 %524
        %528 = vset.pattern.permute.xlu0 0
        %529 = vperm.xlu0 %528, %v452
        %v530 = vpop.permute.xlu0 %529
        %533 = vset.pattern.permute.xlu0 0
        %534 = vperm.xlu0 %533, %v454
        %v535 = vpop.permute.xlu0 %534
        %538 = vset.pattern.permute.xlu0 0
        %539 = vperm.xlu0 %538, %v456
        %v540 = vpop.permute.xlu0 %539
        %v542 = vmul.f32 %v525, %v518
        %v543 = vmul.f32 %v530, %v519
        %v544 = vmul.f32 %v535, %v520
        %v545 = vmul.f32 %v540, %v521
        %v546 = vpack.c.bf16 %v482, %v482
        %v547 = vpack.c.bf16 %v484, %v484
        %v548 = vpack.c.bf16 %v486, %v486
        %v549 = vpack.c.bf16 %v488, %v488
        %v551 = vsel %vm348, %v546, 0
        %vm553 = vcmask 1043456
        %v555 = vsel %vm553, %v344, 0
        %557 = vmatpush.bf16.msra.mxu0 0
        %558 = vmatpush.bf16.msra.mxu0 0
        %559 = vmatpush.bf16.msra.mxu0 0
        %560 = vmatpush.bf16.msra.mxu0 0
        %561 = vmatpush.bf16.msra.mxu0 0
        %562 = vmatpush.bf16.msra.mxu0 0
        %563 = vmatpush.bf16.msra.mxu0 0
        %564 = vmatpush.bf16.msra.mxu0 %v555
        %565 = vmatmul.bf16.gmra.mxu0 %v551
        %v566 = vpop.f32.mrf.mxu0
        %v567 = vadd.f32 0.0, %v566
        %v568 = vpop.f32.mrf.mxu0
        %569 = vdwg.mxu0
        %v571 = vsel %vm348, %v547, 0
        %v574 = vsel %vm553, %v345, 0
        %576 = vmatpush.bf16.msra.mxu0 0
        %577 = vmatpush.bf16.msra.mxu0 0
        %578 = vmatpush.bf16.msra.mxu0 0
        %579 = vmatpush.bf16.msra.mxu0 0
        %580 = vmatpush.bf16.msra.mxu0 0
        %581 = vmatpush.bf16.msra.mxu0 0
        %582 = vmatpush.bf16.msra.mxu0 0
        %583 = vmatpush.bf16.msra.mxu0 %v574
        %584 = vmatmul.bf16.gmra.mxu0 %v571
        %v585 = vpop.f32.mrf.mxu0
        %v586 = vadd.f32 0.0, %v585
        %v587 = vpop.f32.mrf.mxu0
        %588 = vdwg.mxu0
        %v590 = vsel %vm348, %v548, 0
        %v593 = vsel %vm553, %v346, 0
        %595 = vmatpush.bf16.msra.mxu0 0
        %596 = vmatpush.bf16.msra.mxu0 0
        %597 = vmatpush.bf16.msra.mxu0 0
        %598 = vmatpush.bf16.msra.mxu0 0
        %599 = vmatpush.bf16.msra.mxu0 0
        %600 = vmatpush.bf16.msra.mxu0 0
        %601 = vmatpush.bf16.msra.mxu0 0
        %602 = vmatpush.bf16.msra.mxu0 %v593
        %603 = vmatmul.bf16.gmra.mxu0 %v590
        %v604 = vpop.f32.mrf.mxu0
        %v605 = vadd.f32 0.0, %v604
        %v606 = vpop.f32.mrf.mxu0
        %607 = vdwg.mxu0
        %v609 = vsel %vm348, %v549, 0
        %v612 = vsel %vm553, %v347, 0
        %614 = vmatpush.bf16.msra.mxu0 0
        %615 = vmatpush.bf16.msra.mxu0 0
        %616 = vmatpush.bf16.msra.mxu0 0
        %617 = vmatpush.bf16.msra.mxu0 0
        %618 = vmatpush.bf16.msra.mxu0 0
        %619 = vmatpush.bf16.msra.mxu0 0
        %620 = vmatpush.bf16.msra.mxu0 0
        %621 = vmatpush.bf16.msra.mxu0 %v612
        %622 = vmatmul.bf16.gmra.mxu0 %v609
        %v623 = vpop.f32.mrf.mxu0
        %v624 = vadd.f32 0.0, %v623
        %v625 = vpop.f32.mrf.mxu0
        %626 = vdwg.mxu0
        %v627 = vadd.f32 %v542, %v567
        %v628 = vadd.f32 %v543, %v586
        %v629 = vadd.f32 %v544, %v605
        %v630 = vadd.f32 %v545, %v624
        %631 = vst.msk [vmem:[#allocation4] sm:$0xff] %vm348, %v627
        %632 = vst.msk [vmem:[#allocation4 + $0x8] sm:$0xff] %vm348, %v628
        %633 = vst.msk [vmem:[#allocation4 + $0x10] sm:$0xff] %vm348, %v629
        %634 = vst.msk [vmem:[#allocation4 + $0x18] sm:$0xff] %vm348, %v630
        %635 = vst.msk [vmem:[#allocation2] sm:$0xff] %vm513, %v441
        %636 = vst.msk [vmem:[#allocation2 + $0x8] sm:$0xff] %vm513, %v442
        %637 = vst.msk [vmem:[#allocation2 + $0x10] sm:$0xff] %vm513, %v443
        %638 = vst.msk [vmem:[#allocation2 + $0x18] sm:$0xff] %vm513, %v444
        // Predicated region
        $region45: #{multi_head_attention.7} parent=39 // pred_check
          %p639 = pneg %p318
        $region46: #{multi_head_attention.7} parent=39 // pred_check_branch
          %641 = sbr.rel (%p639) target = $region48
        $region47: #{multi_head_attention.7} parent=39 // pred_region
          %v642 = vld [vmem:[#allocation4] sm:$0xff]
          %v643 = vld [vmem:[#allocation4 + $0x8] sm:$0xff]
          %v644 = vld [vmem:[#allocation4 + $0x10] sm:$0xff]
          %v645 = vld [vmem:[#allocation4 + $0x18] sm:$0xff]
          %v646 = vld [vmem:[#allocation3] sm:$0xff]
          %v647 = vld [vmem:[#allocation3 + $0x8] sm:$0xff]
          %v648 = vld [vmem:[#allocation3 + $0x10] sm:$0xff]
          %v649 = vld [vmem:[#allocation3 + $0x18] sm:$0xff]
          %v650 = vrcp.pop %v646
          %v651 = vmul.f32 %v646, %v650
          %v652 = vsub.f32 1.0, %v651
          %v653 = vmul.f32 %v650, %v652
          %v654 = vadd.f32 %v650, %v653
          %vm655 = vweird.f32 %v646
          %vm656 = vweird.f32 %v650
          %vm657 = vmor %vm655, %vm656
          %v658 = vsel %vm657, %v650, %v654
          %v659 = vand.u32 2147483647, %v646
          %vm660 = vcmp.eq.f32.partialorder %v659, 8.507059e+37
          %v661 = vand.u32 %v646, 2147483648
          %v662 = vor.u32 1.1754944e-38, %v661
          %v663 = vsel %vm660, %v662, %v658
          %v664 = vrcp.pop %v647
          %v665 = vmul.f32 %v647, %v664
          %v666 = vsub.f32 1.0, %v665
          %v667 = vmul.f32 %v664, %v666
          %v668 = vadd.f32 %v664, %v667
          %vm669 = vweird.f32 %v647
          %vm670 = vweird.f32 %v664
          %vm671 = vmor %vm669, %vm670
          %v672 = vsel %vm671, %v664, %v668
          %v673 = vand.u32 2147483647, %v647
          %vm674 = vcmp.eq.f32.partialorder %v673, 8.507059e+37
          %v675 = vand.u32 %v647, 2147483648
          %v676 = vor.u32 1.1754944e-38, %v675
          %v677 = vsel %vm674, %v676, %v672
          %v678 = vrcp.pop %v648
          %v679 = vmul.f32 %v648, %v678
          %v680 = vsub.f32 1.0, %v679
          %v681 = vmul.f32 %v678, %v680
          %v682 = vadd.f32 %v678, %v681
          %vm683 = vweird.f32 %v648
          %vm684 = vweird.f32 %v678
          %vm685 = vmor %vm683, %vm684
          %v686 = vsel %vm685, %v678, %v682
          %v687 = vand.u32 2147483647, %v648
          %vm688 = vcmp.eq.f32.partialorder %v687, 8.507059e+37
          %v689 = vand.u32 %v648, 2147483648
          %v690 = vor.u32 1.1754944e-38, %v689
          %v691 = vsel %vm688, %v690, %v686
          %v692 = vrcp.pop %v649
          %v693 = vmul.f32 %v649, %v692
          %v694 = vsub.f32 1.0, %v693
          %v695 = vmul.f32 %v692, %v694
          %v696 = vadd.f32 %v692, %v695
          %vm697 = vweird.f32 %v649
          %vm698 = vweird.f32 %v692
          %vm699 = vmor %vm697, %vm698
          %v700 = vsel %vm699, %v692, %v696
          %v701 = vand.u32 2147483647, %v649
          %vm702 = vcmp.eq.f32.partialorder %v701, 8.507059e+37
          %v703 = vand.u32 %v649, 2147483648
          %v704 = vor.u32 1.1754944e-38, %v703
          %v705 = vsel %vm702, %v704, %v700
          %707 = vset.pattern.permute.xlu0 0
          %708 = vperm.xlu0 %707, %v663
          %v709 = vpop.permute.xlu0 %708
          %712 = vset.pattern.permute.xlu0 0
          %713 = vperm.xlu0 %712, %v677
          %v714 = vpop.permute.xlu0 %713
          %717 = vset.pattern.permute.xlu0 0
          %718 = vperm.xlu0 %717, %v691
          %v719 = vpop.permute.xlu0 %718
          %722 = vset.pattern.permute.xlu0 0
          %723 = vperm.xlu0 %722, %v705
          %v724 = vpop.permute.xlu0 %723
          %v726 = vmul.f32 %v642, %v709
          %v727 = vmul.f32 %v643, %v714
          %v728 = vmul.f32 %v644, %v719
          %v729 = vmul.f32 %v645, %v724
          %v730 = vpack.c.bf16 %v726, %v726
          %v731 = vpack.c.bf16 %v727, %v727
          %v732 = vpack.c.bf16 %v728, %v728
          %v733 = vpack.c.bf16 %v729, %v729
          %vm734 = vcmask 60416
          %735 = vst.msk [vmem:[#allocation5] sm:$0xf] %vm734, %v730
          %737 = vrot.lane.b32.xlu0 %v731, 8
          %v738 = vpop.permute.xlu0 %737
          %vm740 = vcmask 126016
          %741 = vst.msk [vmem:[#allocation5] sm:$0xf] %vm740, %v738
          %743 = vrot.lane.b32.xlu0 %v732, 16
          %v744 = vpop.permute.xlu0 %743
          %vm746 = vcmask 191616
          %747 = vst.msk [vmem:[#allocation5] sm:$0xf] %vm746, %v744
          %749 = vrot.lane.b32.xlu0 %v733, 24
          %v750 = vpop.permute.xlu0 %749
          %vm752 = vcmask 257216
          %753 = vst.msk [vmem:[#allocation5] sm:$0xf] %vm752, %v750
          %v754 = vld [vmem:[#allocation5] sm:$0xf]
          %v755 = vld [vmem:[%s3] sm:$0xf]
          %v756 = vld [vmem:[%s3 + $0x4] sm:$0xf]
          %v757 = vld [vmem:[%s3 + $0x8] sm:$0xf]
          %v758 = vld [vmem:[%s3 + $0xc] sm:$0xf]
          %v759 = vld [vmem:[%s4] sm:$0x1]
          %v761 = vperm.slane %v759, 0
          %v767 = vunpack.c.l.b16 %v755
          %v768 = vunpack.c.l.b16 %v756
          %v769 = vunpack.c.l.b16 %v757
          %v770 = vunpack.c.l.b16 %v758
          %v771 = vpack.c.b16 %v768, %v767
          %v772 = vpack.c.b16 %v770, %v769
          %vm775 = vcmask 261120
          %v777 = vsel %vm775, %v754, 0
          %779 = vmatpush.bf16.msra.mxu0 0
          %780 = vmatpush.bf16.msra.mxu0 0
          %781 = vmatpush.bf16.msra.mxu0 0
          %782 = vmatpush.bf16.msra.mxu0 0
          %783 = vmatpush.bf16.msra.mxu0 0
          %784 = vmatpush.bf16.msra.mxu0 0
          %785 = vmatpush.bf16.msra.mxu0 %v772
          %786 = vmatpush.bf16.msra.mxu0 %v771
          %787 = vmatmul.bf16.gmra.mxu0 %v777
          %v788 = vpop.f32.mrf.mxu0
          %v789 = vadd.f32 %v761, %v788
          %v790 = vpop.f32.mrf.mxu0
          %791 = vdwg.mxu0
          %792 = vst.msk [vmem:[%s292] sm:$0xff] %vm775, %v789
        $region48: #{multi_head_attention.7} parent=39 // pred_fallthru
          _
        %s793 = sand.u32 %s174, 1
        %s794 = scalar_lea.sflag [#allocation7], %s793
        %s795 = sand.u32 %s174, 1
        %s796 = smul.addr %s795, 8
        %s797 = scalar_lea.vmem [#allocation6], %s796
        // Predicated region
        $region49: #{multi_head_attention.7} parent=39 // pred_check
          %p798 = pneg %p184
        $region50: #{multi_head_attention.7} parent=39 // pred_check_branch
          %800 = sbr.rel (%p798) target = $region52
        $region51: #{multi_head_attention.7} parent=39 // pred_region
          %802 = vsyncadd %s794, 0
          %s803 = sadd.s32 %s25, %s24
          %s804 = smul.addr %s803, 8
          %s805 = scalar_lea.hbm %s5, %s804
          %s807 = sshll.u32 %s797, 4
          %s808 = int_to_ptr.vmem [resolvable:$true] %s807
          %s809 = sshll.u32 %s805, 4
          %s810 = int_to_ptr.hbm [resolvable:$true] %s809
          %812 = dma.vmem_to_hbm [thread:$0]  %s808, 128, %s810, %s794
        $region52: #{multi_head_attention.7} parent=39 // pred_fallthru
          _
      $region40: #{multi_head_attention.7} parent=5 // pred_fallthru
        _
      %p813 = scmp.le.s32.totalorder 2, %s14
      // Predicated region
      $region53: #{multi_head_attention.7} parent=5 // pred_check
        %p814 = pneg %p813
      $region54: #{multi_head_attention.7} parent=5 // pred_check_branch
        %816 = sbr.rel (%p814) target = $region56
      $region55: #{multi_head_attention.7} parent=5 // pred_region
        %s817 = ssub.s32 %s14, 2
        // Predicated region
        $region57: #{multi_head_attention.7} parent=55 // pred_check
          %p818 = pneg %p190
        $region58: #{multi_head_attention.7} parent=55 // pred_check_branch
          %820 = sbr.rel (%p818) target = $region60
        $region59: #{multi_head_attention.7} parent=55 // pred_region
          %s821 = sand.u32 %s175, 1
          %s822 = scalar_lea.sflag [#allocation7], %s821
          %s823 = sand.u32 %s175, 1
          %s824 = smul.addr %s823, 8
          %s825 = scalar_lea.vmem [#allocation6], %s824
          %827 = dma.done %s822, 128
        $region60: #{multi_head_attention.7} parent=55 // pred_fallthru
          _
      $region56: #{multi_head_attention.7} parent=5 // pred_fallthru
        _
    $region6: #{multi_head_attention.7} parent=1 // loop_footer
      %s18 = sadd.s32 1, %s14
    $region7: #{multi_head_attention.7} parent=1 // loop_footer_branch
      %13 = sbr.rel target = $region3
    $region8: #{multi_head_attention.7} parent=1 // loop_exit
      _
    %828 = vsyncpa [#allocation7], 1
    %s829 = scalar_lea.sflag [#allocation7], 1
    %830 = vsyncpa %s829, 1

</llo_original>
